<compile_context>
chip_gen: v7x
topology: tpu7x:2x2x1
jax: 0.10.0
libtpu: 0.0.40
codegen_flags: <defaults>
</compile_context>

<pallas_src>
import math

import jax
import jax.numpy as jnp
import numpy as np
from jax.experimental import pallas as pl
from jax.experimental.pallas import tpu as pltpu

LANE = 128


def _round_up(n, m):
    return ((n + m - 1) // m) * m


def _pad1(v, n):
    return jnp.pad(v, (0, n - v.shape[0]))


def _pad2(a, r, c):
    return jnp.pad(a, ((0, r - a.shape[0]), (0, c - a.shape[1])))


# --------------------------------------------------------------------------- #
# Kernels
# --------------------------------------------------------------------------- #
def _general_conv_kernel(m_ref, hk_ref, hi_ref, aea_ref, wm_ref, we_ref, ws_ref,
                         rb_ref, out_ref, acc_ref):
    """One GeneralConv layer (heads=1, aggr='add') + ReLU.

    grid = (row blocks i, reduction blocks k) over the [N, N] edge-count
    operator.  acc accumulates  mcount[i, k] @ (h[k] @ W_msg)  over k; at the
    last k step the per-row extras (aggregated edge features, self term,
    degree-scaled biases) are added and ReLU applied.
    """
    f32 = jnp.float32
    k = pl.program_id(1)

    @pl.when(k == 0)
    def _init():
        acc_ref[...] = jnp.zeros_like(acc_ref)

    # Project to the narrower layer width first, then apply the N x N operator.
    hw = jnp.dot(hk_ref[...], wm_ref[...], preferred_element_type=f32)
    acc_ref[...] += jnp.dot(m_ref[...], hw.astype(jnp.bfloat16),
                            preferred_element_type=f32)

    @pl.when(k == pl.num_programs(1) - 1)
    def _finalize():
        extras = (jnp.dot(aea_ref[...], we_ref[...], preferred_element_type=f32)
                  + jnp.dot(hi_ref[...], ws_ref[...], preferred_element_type=f32)
                  + rb_ref[...])
        out_ref[...] = jnp.maximum(acc_ref[...] + extras, 0.0).astype(out_ref.dtype)


def _gcn_head_kernel(a_ref, hk_ref, w_ref, b_ref, out_ref, acc_ref):
    """Fused GCNConv mu/logstd head:  A_hat @ (h2 @ [Wmu||Wls]) + [bmu||bls]."""
    f32 = jnp.float32
    k = pl.program_id(1)

    @pl.when(k == 0)
    def _init():
        acc_ref[...] = jnp.zeros_like(acc_ref)

    hw = jnp.dot(hk_ref[...], w_ref[...], preferred_element_type=f32)
    acc_ref[...] += jnp.dot(a_ref[...], hw.astype(jnp.bfloat16),
                            preferred_element_type=f32)

    @pl.when(k == pl.num_programs(1) - 1)
    def _finalize():
        out_ref[...] = acc_ref[...] + b_ref[...]


# --------------------------------------------------------------------------- #
# Tiled pallas_call wrappers
# --------------------------------------------------------------------------- #
def _tiled_general_conv(op_bf, h_bf, agg_ea_bf, wm, we, ws, row_bias, *,
                        tile_m, tile_k, vmem_limit):
    n_pad = op_bf.shape[0]
    c_p = h_bf.shape[1]
    f_p = agg_ea_bf.shape[1]
    l_p = wm.shape[1]
    grid = (n_pad // tile_m, n_pad // tile_k)
    return pl.pallas_call(
        _general_conv_kernel,
        out_shape=jax.ShapeDtypeStruct((n_pad, l_p), jnp.bfloat16),
        grid_spec=pltpu.PrefetchScalarGridSpec(
            num_scalar_prefetch=0,
            grid=grid,
            in_specs=[
                pl.BlockSpec((tile_m, tile_k), lambda i, k: (i, k)),   # mcount tile
                pl.BlockSpec((tile_k, c_p), lambda i, k: (k, 0)),      # h, reduction rows
                pl.BlockSpec((tile_m, c_p), lambda i, k: (i, 0)),      # h, output rows (self)
                pl.BlockSpec((tile_m, f_p), lambda i, k: (i, 0)),      # sum_e edge_attr
                pl.BlockSpec((c_p, l_p), lambda i, k: (0, 0)),         # W_msg
                pl.BlockSpec((f_p, l_p), lambda i, k: (0, 0)),         # W_edge
                pl.BlockSpec((c_p, l_p), lambda i, k: (0, 0)),         # W_self
                pl.BlockSpec((tile_m, l_p), lambda i, k: (i, 0)),      # deg*(bm+be)+bs
            ],
            out_specs=pl.BlockSpec((tile_m, l_p), lambda i, k: (i, 0)),
            scratch_shapes=[pltpu.VMEM((tile_m, l_p), jnp.float32)],
        ),
        compiler_params=pltpu.CompilerParams(
            dimension_semantics=("parallel", "arbitrary"),
            vmem_limit_bytes=vmem_limit,
        ),
    )(op_bf, h_bf, h_bf, agg_ea_bf, wm, we, ws, row_bias)


def _tiled_gcn_head(ahat_bf, h_bf, w_cat, b_cat, *, tile_m, tile_k, vmem_limit):
    n_pad = ahat_bf.shape[0]
    l_p = h_bf.shape[1]
    co_p = w_cat.shape[1]
    grid = (n_pad // tile_m, n_pad // tile_k)
    return pl.pallas_call(
        _gcn_head_kernel,
        out_shape=jax.ShapeDtypeStruct((n_pad, co_p), jnp.float32),
        grid_spec=pltpu.PrefetchScalarGridSpec(
            num_scalar_prefetch=0,
            grid=grid,
            in_specs=[
                pl.BlockSpec((tile_m, tile_k), lambda i, k: (i, k)),   # A_hat tile
                pl.BlockSpec((tile_k, l_p), lambda i, k: (k, 0)),      # h2 reduction rows
                pl.BlockSpec((l_p, co_p), lambda i, k: (0, 0)),        # [Wmu || Wls]
                pl.BlockSpec((1, co_p), lambda i, k: (0, 0)),          # [bmu || bls]
            ],
            out_specs=pl.BlockSpec((tile_m, co_p), lambda i, k: (i, 0)),
            scratch_shapes=[pltpu.VMEM((tile_m, co_p), jnp.float32)],
        ),
        compiler_params=pltpu.CompilerParams(
            dimension_semantics=("parallel", "arbitrary"),
            vmem_limit_bytes=vmem_limit,
        ),
    )(ahat_bf, h_bf, w_cat, b_cat)


# --------------------------------------------------------------------------- #
# Forward pass
# --------------------------------------------------------------------------- #
def vpfae_forward(x, edge_index, edge_attr, params, *, tile_m=256, tile_k=256,
                  vmem_limit_bytes=48 * 1024 * 1024):
    """VGAE encoder forward.

    Graph glue (built with scatter-add, no dense [N,E] matmuls):
      mcount [Npad, Npad]  edge-count operator   mcount[i, j] = #edges j -> i
      deg    [Npad, 1]     in-degree
      agg_ea [Npad, Fe]    sum of edge_attr over incoming edges (layer independent)
      ahat   [Npad, Npad]  GCN-normalized adjacency with self loops
    All feature dims are zero-padded to 128 lanes; MXU operands cast to bf16.

    Tile guidance: 128-multiples (and modest tiles) for v5e; 256-multiples for
    v6e / v7x; re-derive VMEM budget for v7x's 64 MiB.
    """
    f32, bf16 = jnp.float32, jnp.bfloat16
    N, c_in = x.shape
    E, fe = edge_attr.shape
    p = params
    l1 = p['wm1'].shape[1]
    l2 = p['wm2'].shape[1]
    cout = p['wmu'].shape[1]

    lcm = tile_m * tile_k // math.gcd(tile_m, tile_k)
    n_pad = _round_up(max(N, lcm), lcm)
    c_p = _round_up(c_in, LANE)
    f_p = _round_up(fe, LANE)
    l1_p = _round_up(l1, LANE)
    l2_p = _round_up(l2, LANE)
    co_p = _round_up(2 * cout, LANE)

    src = edge_index[0].astype(jnp.int32)
    dst = edge_index[1].astype(jnp.int32)

    # --- graph operators via scatter-add ------------------------------------
    mcount = jnp.zeros((n_pad, n_pad), f32).at[dst, src].add(1.0)
    deg = jnp.zeros((n_pad,), f32).at[dst].add(1.0)[:, None]            # [Npad, 1]
    agg_ea = jnp.zeros((n_pad, fe), f32).at[dst].add(edge_attr)         # S @ edge_attr
    agg_ea = _pad2(agg_ea, n_pad, f_p)

    loop = jnp.arange(N, dtype=jnp.int32)
    s_sl = jnp.concatenate([src, loop])
    d_sl = jnp.concatenate([dst, loop])
    dgcn = jnp.zeros((n_pad,), f32).at[d_sl].add(1.0)
    dinv = jnp.where(dgcn > 0, jax.lax.rsqrt(dgcn), 0.0)
    ahat = jnp.zeros((n_pad, n_pad), f32).at[d_sl, s_sl].add(dinv[d_sl] * dinv[s_sl])

    xp = _pad2(x, n_pad, c_p)

    # --- pad weights to lane boundaries, cast MXU operands to bf16 ----------
    wm1 = _pad2(p['wm1'], c_p, l1_p).astype(bf16)
    we1 = _pad2(p['we1'], f_p, l1_p).astype(bf16)
    ws1 = _pad2(p['ws1'], c_p, l1_p).astype(bf16)
    rb1 = (deg * _pad1(p['bm1'] + p['be1'], l1_p)[None, :]
           + _pad1(p['bs1'], l1_p)[None, :]).astype(f32)

    wm2 = _pad2(p['wm2'], l1_p, l2_p).astype(bf16)
    we2 = _pad2(p['we2'], f_p, l2_p).astype(bf16)
    ws2 = _pad2(p['ws2'], l1_p, l2_p).astype(bf16)
    rb2 = (deg * _pad1(p['bm2'] + p['be2'], l2_p)[None, :]
           + _pad1(p['bs2'], l2_p)[None, :]).astype(f32)

    # fused mu / logstd head
    w_cat = _pad2(jnp.concatenate([p['wmu'], p['wls']], axis=1), l2_p, co_p).astype(bf16)
    b_cat = _pad1(jnp.concatenate([p['bmu'], p['bls']]), co_p)[None, :].astype(f32)

    mcount_bf = mcount.astype(bf16)
    ahat_bf = ahat.astype(bf16)
    agg_ea_bf = agg_ea.astype(bf16)
    xp_bf = xp.astype(bf16)

    # --- three tiled kernel calls --------------------------------------------
    h1 = _tiled_general_conv(mcount_bf, xp_bf, agg_ea_bf, wm1, we1, ws1, rb1,
                             tile_m=tile_m, tile_k=tile_k, vmem_limit=vmem_limit_bytes)
    h2 = _tiled_general_conv(mcount_bf, h1, agg_ea_bf, wm2, we2, ws2, rb2,
                             tile_m=tile_m, tile_k=tile_k, vmem_limit=vmem_limit_bytes)
    mu_ls = _tiled_gcn_head(ahat_bf, h2, w_cat, b_cat,
                            tile_m=tile_m, tile_k=tile_k, vmem_limit=vmem_limit_bytes)

    mu = mu_ls[:N, :cout]
    logstd = mu_ls[:N, cout:2 * cout]
    return mu, logstd


# --------------------------------------------------------------------------- #
# Params + pure-JAX reference (PyG semantics)
# --------------------------------------------------------------------------- #
def init_params(key, in_channels, out_channels, edge_features):
    l1 = in_channels - math.floor((in_channels - out_channels) / 3)
    l2 = in_channels - math.floor(2 * (in_channels - out_channels) / 3)
    ks = jax.random.split(key, 14)

    def w(k, shape):
        return jax.random.normal(k, shape, jnp.float32) * 0.1

    return dict(
        # GeneralConv 1: lin_msg, lin_edge, lin_self   (weights stored [in, out])
        wm1=w(ks[0], (in_channels, l1)), bm1=w(ks[1], (l1,)),
        we1=w(ks[2], (edge_features, l1)), be1=w(ks[3], (l1,)),
        ws1=w(ks[4], (in_channels, l1)), bs1=w(ks[5], (l1,)),
        # GeneralConv 2
        wm2=w(ks[6], (l1, l2)), bm2=w(ks[7], (l2,)),
        we2=w(ks[8], (edge_features, l2)), be2=w(ks[9], (l2,)),
        ws2=w(ks[10], (l1, l2)), bs2=w(ks[11], (l2,)),
        # GCNConv mu / logstd (PyG GCNConv bias starts at zero)
        wmu=w(ks[12], (l2, out_channels)), bmu=jnp.zeros((out_channels,), jnp.float32),
        wls=w(ks[13], (l2, out_channels)), bls=jnp.zeros((out_channels,), jnp.float32),
    )


def vpfae_ref(x, edge_index, edge_attr, p):
    """Pure-JAX f32 reference (scatter/gather form) matching PyG semantics."""
    N = x.shape[0]
    src, dst = edge_index[0], edge_index[1]

    def gen_conv(h, wm, bm, we, be, ws, bs):
        msg = h[src] @ wm + bm + edge_attr @ we + be
        agg = jnp.zeros((N, wm.shape[1]), h.dtype).at[dst].add(msg)
        return agg + h @ ws + bs

    def gcn(h, w, b):
        loop = jnp.arange(N)
        s = jnp.concatenate([src, loop])
        d = jnp.concatenate([dst, loop])
        deg = jnp.zeros((N,), h.dtype).at[d].add(1.0)
        dinv = jax.lax.rsqrt(deg)
        norm = dinv[d] * dinv[s]
        hw = h @ w
        return jnp.zeros((N, w.shape[1]), h.dtype).at[d].add(norm[:, None] * hw[s]) + b

    h1 = jax.nn.relu(gen_conv(x, p['wm1'], p['bm1'], p['we1'], p['be1'], p['ws1'], p['bs1']))
    h2 = jax.nn.relu(gen_conv(h1, p['wm2'], p['bm2'], p['we2'], p['be2'], p['ws2'], p['bs2']))
    return gcn(h2, p['wmu'], p['bmu']), gcn(h2, p['wls'], p['bls'])


if __name__ == "__main__":
    key = jax.random.PRNGKey(0)
    N, E = 200, 600                       # pads to 256 with 128-tiles -> 2x2 grid
    in_channels, out_channels, edge_features = 12, 3, 4

    kx, ke, ka, kp = jax.random.split(key, 4)
    x = jax.random.normal(kx, (N, in_channels), jnp.float32)
    edge_index = jax.random.randint(ke, (2, E), 0, N, dtype=jnp.int32)
    edge_attr = jax.random.normal(ka, (E, edge_features), jnp.float32)
    params = init_params(kp, in_channels, out_channels, edge_features)

    # 128-multiple tiles work on every generation (v5e MXU is 128-wide); use
    # 256-multiples on v6e/v7x for big graphs.
    mu, logstd = vpfae_forward(x, edge_index, edge_attr, params,
                               tile_m=128, tile_k=128)
    jax.block_until_ready((mu, logstd))

    mu_ref, logstd_ref = vpfae_ref(x, edge_index, edge_attr, params)
    # bf16 MXU operands with f32 accumulation -> loosened tolerance.
    np.testing.assert_allclose(np.asarray(mu), np.asarray(mu_ref), rtol=5e-2, atol=5e-2)
    np.testing.assert_allclose(np.asarray(logstd), np.asarray(logstd_ref), rtol=5e-2, atol=5e-2)

    print("KERNEL_OK")
</pallas_src>

<mosaic_0001>
module attributes {stable_mosaic.version = 11 : i64} {
  func.func @_general_conv_kernel(%arg0: i32, %arg1: i32, %arg2: memref<128x128xbf16, #tpu.memory_space<vmem>>, %arg3: memref<128x128xbf16, #tpu.memory_space<vmem>>, %arg4: memref<128x128xbf16, #tpu.memory_space<vmem>>, %arg5: memref<128x128xbf16, #tpu.memory_space<vmem>>, %arg6: memref<128x128xbf16, #tpu.memory_space<vmem>>, %arg7: memref<128x128xbf16, #tpu.memory_space<vmem>>, %arg8: memref<128x128xbf16, #tpu.memory_space<vmem>>, %arg9: memref<128x128xf32, #tpu.memory_space<vmem>>, %arg10: memref<128x128xbf16, #tpu.memory_space<vmem>>, %arg11: memref<128x128xf32, #tpu.memory_space<vmem>>) attributes {dimension_semantics = [#tpu.dimension_semantics<parallel>, #tpu.dimension_semantics<arbitrary>], iteration_bounds = array<i64: 2, 2>, scalar_prefetch = 0 : i64, scratch_operands = 1 : i64, tpu.core_type = #tpu.core_type<tc>, window_params = [{transform_indices = @transform_0, window_bounds = array<i64: 128, 128>}, {transform_indices = @transform_1, window_bounds = array<i64: 128, 128>}, {transform_indices = @transform_2, window_bounds = array<i64: 128, 128>}, {transform_indices = @transform_3, window_bounds = array<i64: 128, 128>}, {pipeline_mode = #tpu.pipeline_mode<synchronous>, transform_indices = @transform_4, window_bounds = array<i64: 128, 128>}, {pipeline_mode = #tpu.pipeline_mode<synchronous>, transform_indices = @transform_5, window_bounds = array<i64: 128, 128>}, {pipeline_mode = #tpu.pipeline_mode<synchronous>, transform_indices = @transform_6, window_bounds = array<i64: 128, 128>}, {transform_indices = @transform_7, window_bounds = array<i64: 128, 128>}, {transform_indices = @transform_8, window_bounds = array<i64: 128, 128>}]} {
    %c0_i32 = arith.constant 0 : i32
    %0 = arith.cmpi eq, %arg1, %c0_i32 : i32
    %1 = arith.extui %0 : i1 to i32
    %c0_i32_0 = arith.constant 0 : i32
    %2 = arith.cmpi ne, %1, %c0_i32_0 : i32
    scf.if %2 {
      %cst_12 = arith.constant 0.000000e+00 : f32
      %15 = vector.broadcast %cst_12 : f32 to vector<128x128xf32>
      %c0_13 = arith.constant 0 : index
      %c0_14 = arith.constant 0 : index
      %16 = vector.load %arg11[%c0_13, %c0_14] : memref<128x128xf32, #tpu.memory_space<vmem>>, vector<128x128xf32>
      tpu.vector_store %arg11[%c0_13, %c0_14], %15 {strides = array<i32>} : memref<128x128xf32, #tpu.memory_space<vmem>>, vector<128x128xf32>,
    } else {
    }
    %c0 = arith.constant 0 : index
    %c0_1 = arith.constant 0 : index
    %3 = vector.load %arg3[%c0, %c0_1] : memref<128x128xbf16, #tpu.memory_space<vmem>>, vector<128x128xbf16>
    %c0_2 = arith.constant 0 : index
    %c0_3 = arith.constant 0 : index
    %4 = vector.load %arg6[%c0_2, %c0_3] : memref<128x128xbf16, #tpu.memory_space<vmem>>, vector<128x128xbf16>
    %cst = arith.constant dense<0.000000e+00> : vector<128x128xf32>
    %5 = tpu.matmul %3, %4, %cst {dimension_numbers = #tpu.dot_dimension_numbers<[1], [0], [0], [1], [0, 0, 1, 1], [], []>} : vector<128x128xbf16>, vector<128x128xbf16>, vector<128x128xf32> -> vector<128x128xf32>
    %c0_4 = arith.constant 0 : index
    %c0_5 = arith.constant 0 : index
    %6 = vector.load %arg11[%c0_4, %c0_5] : memref<128x128xf32, #tpu.memory_space<vmem>>, vector<128x128xf32>
    %c0_6 = arith.constant 0 : index
    %c0_7 = arith.constant 0 : index
    %7 = vector.load %arg2[%c0_6, %c0_7] : memref<128x128xbf16, #tpu.memory_space<vmem>>, vector<128x128xbf16>
    %8 = arith.truncf %5 : vector<128x128xf32> to vector<128x128xbf16>
    %cst_8 = arith.constant dense<0.000000e+00> : vector<128x128xf32>
    %9 = tpu.matmul %7, %8, %cst_8 {dimension_numbers = #tpu.dot_dimension_numbers<[1], [0], [0], [1], [0, 0, 1, 1], [], []>} : vector<128x128xbf16>, vector<128x128xbf16>, vector<128x128xf32> -> vector<128x128xf32>
    %10 = arith.addf %6, %9 : vector<128x128xf32>
    %c0_9 = arith.constant 0 : index
    %c0_10 = arith.constant 0 : index
    %11 = vector.load %arg11[%c0_9, %c0_10] : memref<128x128xf32, #tpu.memory_space<vmem>>, vector<128x128xf32>
    tpu.vector_store %arg11[%c0_9, %c0_10], %10 {strides = array<i32>} : memref<128x128xf32, #tpu.memory_space<vmem>>, vector<128x128xf32>,
    %c1_i32 = arith.constant 1 : i32
    %12 = arith.cmpi eq, %arg1, %c1_i32 : i32
    %13 = arith.extui %12 : i1 to i32
    %c0_i32_11 = arith.constant 0 : i32
    %14 = arith.cmpi ne, %13, %c0_i32_11 : i32
    scf.if %14 {
      %c0_12 = arith.constant 0 : index
      %c0_13 = arith.constant 0 : index
      %15 = vector.load %arg5[%c0_12, %c0_13] : memref<128x128xbf16, #tpu.memory_space<vmem>>, vector<128x128xbf16>
      %c0_14 = arith.constant 0 : index
      %c0_15 = arith.constant 0 : index
      %16 = vector.load %arg7[%c0_14, %c0_15] : memref<128x128xbf16, #tpu.memory_space<vmem>>, vector<128x128xbf16>
      %cst_16 = arith.constant dense<0.000000e+00> : vector<128x128xf32>
      %17 = tpu.matmul %15, %16, %cst_16 {dimension_numbers = #tpu.dot_dimension_numbers<[1], [0], [0], [1], [0, 0, 1, 1], [], []>} : vector<128x128xbf16>, vector<128x128xbf16>, vector<128x128xf32> -> vector<128x128xf32>
      %c0_17 = arith.constant 0 : index
      %c0_18 = arith.constant 0 : index
      %18 = vector.load %arg4[%c0_17, %c0_18] : memref<128x128xbf16, #tpu.memory_space<vmem>>, vector<128x128xbf16>
      %c0_19 = arith.constant 0 : index
      %c0_20 = arith.constant 0 : index
      %19 = vector.load %arg8[%c0_19, %c0_20] : memref<128x128xbf16, #tpu.memory_space<vmem>>, vector<128x128xbf16>
      %cst_21 = arith.constant dense<0.000000e+00> : vector<128x128xf32>
      %20 = tpu.matmul %18, %19, %cst_21 {dimension_numbers = #tpu.dot_dimension_numbers<[1], [0], [0], [1], [0, 0, 1, 1], [], []>} : vector<128x128xbf16>, vector<128x128xbf16>, vector<128x128xf32> -> vector<128x128xf32>
      %21 = arith.addf %17, %20 : vector<128x128xf32>
      %c0_22 = arith.constant 0 : index
      %c0_23 = arith.constant 0 : index
      %22 = vector.load %arg9[%c0_22, %c0_23] : memref<128x128xf32, #tpu.memory_space<vmem>>, vector<128x128xf32>
      %23 = arith.addf %21, %22 : vector<128x128xf32>
      %c0_24 = arith.constant 0 : index
      %c0_25 = arith.constant 0 : index
      %24 = vector.load %arg11[%c0_24, %c0_25] : memref<128x128xf32, #tpu.memory_space<vmem>>, vector<128x128xf32>
      %25 = arith.addf %24, %23 : vector<128x128xf32>
      %cst_26 = arith.constant 0.000000e+00 : f32
      %26 = vector.broadcast %cst_26 : f32 to vector<128x128xf32>
      %27 = arith.maximumf %25, %26 : vector<128x128xf32>
      %28 = arith.truncf %27 : vector<128x128xf32> to vector<128x128xbf16>
      %c0_27 = arith.constant 0 : index
      %c0_28 = arith.constant 0 : index
      %29 = vector.load %arg10[%c0_27, %c0_28] : memref<128x128xbf16, #tpu.memory_space<vmem>>, vector<128x128xbf16>
      tpu.vector_store %arg10[%c0_27, %c0_28], %28 {strides = array<i32>} : memref<128x128xbf16, #tpu.memory_space<vmem>>, vector<128x128xbf16>,
    } else {
    }
    return
  }
  func.func @transform_0(%arg0: i32, %arg1: i32) -> (i32, i32) {
    %c0_i32 = arith.constant 0 : i32
    return %arg0, %arg1 : i32, i32
  }
  func.func @transform_1(%arg0: i32, %arg1: i32) -> (i32, i32) {
    %c0_i32 = arith.constant 0 : i32
    %c0_i32_0 = arith.constant 0 : i32
    return %arg1, %c0_i32 : i32, i32
  }
  func.func @transform_2(%arg0: i32, %arg1: i32) -> (i32, i32) {
    %c0_i32 = arith.constant 0 : i32
    %c0_i32_0 = arith.constant 0 : i32
    return %arg0, %c0_i32 : i32, i32
  }
  func.func @transform_3(%arg0: i32, %arg1: i32) -> (i32, i32) {
    %c0_i32 = arith.constant 0 : i32
    %c0_i32_0 = arith.constant 0 : i32
    return %arg0, %c0_i32 : i32, i32
  }
  func.func @transform_4(%arg0: i32, %arg1: i32) -> (i32, i32) {
    %c0_i32 = arith.constant 0 : i32
    %c0_i32_0 = arith.constant 0 : i32
    %c0_i32_1 = arith.constant 0 : i32
    return %c0_i32, %c0_i32_0 : i32, i32
  }
  func.func @transform_5(%arg0: i32, %arg1: i32) -> (i32, i32) {
    %c0_i32 = arith.constant 0 : i32
    %c0_i32_0 = arith.constant 0 : i32
    %c0_i32_1 = arith.constant 0 : i32
    return %c0_i32, %c0_i32_0 : i32, i32
  }
  func.func @transform_6(%arg0: i32, %arg1: i32) -> (i32, i32) {
    %c0_i32 = arith.constant 0 : i32
    %c0_i32_0 = arith.constant 0 : i32
    %c0_i32_1 = arith.constant 0 : i32
    return %c0_i32, %c0_i32_0 : i32, i32
  }
  func.func @transform_7(%arg0: i32, %arg1: i32) -> (i32, i32) {
    %c0_i32 = arith.constant 0 : i32
    %c0_i32_0 = arith.constant 0 : i32
    return %arg0, %c0_i32 : i32, i32
  }
  func.func @transform_8(%arg0: i32, %arg1: i32) -> (i32, i32) {
    %c0_i32 = arith.constant 0 : i32
    %c0_i32_0 = arith.constant 0 : i32
    return %arg0, %c0_i32 : i32, i32
  }
}

</mosaic_0001>

<llo_original>
// kernel: tpu_custom_call.1
$region0: #{tpu_custom_call.1}
  #allocation0 [shape = 'u32[]', space=smem, size = 0x4, offset = 0x4, fixed_abs, tag = 'smem constant byte address 0x4 - core index']
  #allocation1 [shape = 'u32[144,128]{1,0:T(1,128)}', space=vmem, size = 0x12000, scoped, tag = 'internal scratch']
  #allocation2 [shape = 'f32[128,128]{1,0:T(8,128)}', space=vmem, size = 0x10000, scoped, tag = 'scratch operand']
  %s0 = inlined_call_operand.hbm [shape: bf16[256,256], index: 0, kind: input, shape index: {}]
  %s1 = inlined_call_operand.hbm [shape: bf16[256,128], index: 1, kind: input, shape index: {}]
  %s2 = inlined_call_operand.hbm [shape: bf16[256,128], index: 2, kind: input, shape index: {}]
  %s3 = inlined_call_operand.hbm [shape: bf16[256,128], index: 3, kind: input, shape index: {}]
  %s4 = inlined_call_operand.hbm [shape: bf16[128,128], index: 4, kind: input, shape index: {}]
  %s5 = inlined_call_operand.hbm [shape: bf16[128,128], index: 5, kind: input, shape index: {}]
  %s6 = inlined_call_operand.hbm [shape: bf16[128,128], index: 6, kind: input, shape index: {}]
  %s7 = inlined_call_operand.hbm [shape: f32[256,128], index: 7, kind: input, shape index: {}]
  %s8 = inlined_call_operand.hbm [shape: bf16[256,128], index: 8, kind: output, shape index: {}]
  %s9 = sld [smem:[#allocation0]]
  $region105: #{tpu_custom_call.1} parent=0
    _
  %s11 = ssub.s32 1, %s9
  %s12 = scalar_select 0, %s11, %s9
  $region1: #{tpu_custom_call.1} parent=0
    #allocation3 [shape = 'u8[65536]{0}', space=vmem, size = 0x10000, scoped, tag = 'input window, operand 0']
    #allocation4 [shape = 's32[2]{0}', space=sflag, size = 0x8, scoped, tag = 'scoped memory for tpu_custom_call.1']
    #allocation5 [shape = 's32[2]{0}', space=sflag, size = 0x8, scoped, tag = 'scoped memory for tpu_custom_call.1']
    #allocation6 [shape = 'u8[65536]{0}', space=vmem, size = 0x10000, scoped, tag = 'input window, operand 1']
    #allocation7 [shape = 's32[2]{0}', space=sflag, size = 0x8, scoped, tag = 'scoped memory for tpu_custom_call.1']
    #allocation8 [shape = 'u8[65536]{0}', space=vmem, size = 0x10000, scoped, tag = 'input window, operand 2']
    #allocation9 [shape = 'u8[65536]{0}', space=vmem, size = 0x10000, scoped, tag = 'input window, operand 3']
    #allocation10 [shape = 's32[2]{0}', space=sflag, size = 0x8, scoped, tag = 'scoped memory for tpu_custom_call.1']
    #allocation11 [shape = 'u8[32768]{0}', space=vmem, size = 0x8000, scoped, tag = 'input window, operand 4, single buffered']
    #allocation12 [shape = 'u8[32768]{0}', space=vmem, size = 0x8000, scoped, tag = 'input window, operand 5, single buffered']
    #allocation13 [shape = 's32[1]{0}', space=sflag, size = 0x4, scoped, tag = 'scoped memory for tpu_custom_call.1']
    #allocation14 [shape = 'u8[32768]{0}', space=vmem, size = 0x8000, scoped, tag = 'input window, operand 6, single buffered']
    #allocation15 [shape = 'u8[131072]{0}', space=vmem, size = 0x20000, scoped, tag = 'input window, operand 7']
    #allocation16 [shape = 's32[2]{0}', space=sflag, size = 0x8, scoped, tag = 'scoped memory for tpu_custom_call.1']
    #allocation17 [shape = 'u8[65536]{0}', space=vmem, size = 0x10000, scoped, tag = 'output window, operand 0']
    %13 = vsyncpa [#allocation4], 0
    %s14 = scalar_lea.sflag [#allocation4], 1
    %15 = vsyncpa %s14, 0
    %16 = vsyncpa [#allocation7], 0
    %s17 = scalar_lea.sflag [#allocation7], 1
    %18 = vsyncpa %s17, 0
    %19 = vsyncpa [#allocation10], 0
    %s20 = scalar_lea.sflag [#allocation10], 1
    %21 = vsyncpa %s20, 0
    %22 = vsyncpa [#allocation13], 0
    %23 = vsyncpa [#allocation16], 0
    %s24 = scalar_lea.sflag [#allocation16], 1
    %25 = vsyncpa %s24, 0
    %26 = vsyncpa [#allocation5], 0
    %s27 = scalar_lea.sflag [#allocation5], 1
    %28 = vsyncpa %s27, 0
    loop: start=0, step=1, limit=6
    $region2: #{tpu_custom_call.1} parent=1 // loop_pre_header
      _
    $region3: #{tpu_custom_call.1} parent=1 // loop_header
      %s30 = sphi 0, %s34
      %p31 = scmp.ge.s32.totalorder %s30, 6
      %s37 = sphi 0, %s49
      %s38 = sphi 0, %s45
      %s39 = sphi 0, %s37
      %s40 = sphi 0, %s38
      %s41 = sphi 0, %s39
      %s42 = sphi 0, %s40
      %s54 = sphi 0, %s56
      %s57 = sphi 0, %s54
      %s58 = sphi 0, %s57
      %s74 = sphi 0, %s58
      %s80 = sphi 0, %s82
      %s83 = sphi 0, %s80
      %s84 = sphi 0, %s83
      %s100 = sphi 0, %s84
      %s106 = sphi 0, %s108
      %s109 = sphi 0, %s106
      %s110 = sphi 0, %s109
      %s126 = sphi 0, %s110
      %s132 = sphi 0, %s134
      %s135 = sphi 0, %s132
      %s136 = sphi 0, %s135
      %s152 = sphi 0, %s136
      %s156 = sphi 0, %s156
      %s158 = sphi 0, %s156
      %s159 = sphi 0, %s158
      %s173 = sphi 0, %s159
      %s177 = sphi 0, %s177
      %s179 = sphi 0, %s177
      %s180 = sphi 0, %s179
      %s194 = sphi 0, %s180
      %s198 = sphi 0, %s198
      %s200 = sphi 0, %s198
      %s201 = sphi 0, %s200
      %s215 = sphi 0, %s201
      %s221 = sphi 0, %s223
      %s224 = sphi 0, %s221
      %s225 = sphi 0, %s224
      %s241 = sphi 0, %s225
      %s247 = sphi 0, %s249
      %s250 = sphi 0, %s247
      %s251 = sphi 0, %s250
      %s267 = sphi 0, %s251
    $region4: #{tpu_custom_call.1} parent=1 // loop_header_branch
      %33 = sbr.rel (%p31) target = $region8
    $region5: #{tpu_custom_call.1} parent=1 // loop_body
      %s35 = ssub.s32 %s30, 1
      %s36 = ssub.s32 %s30, 2
      %s43 = sadd.s32 1, %s38
      %p44 = scmp.ge.s32.totalorder %s43, 2
      %s45 = scalar_select %p44, 0, %s43
      %s46 = sadd.s32 1, %s37
      %s47 = scalar_select %p44, %s46, %s37
      %p48 = scmp.ge.s32.totalorder %s47, 2
      %s49 = scalar_select %p48, 0, %s47
      %s50 = ssub.s32 %s37, %s49
      %s51 = ssub.s32 %s38, %s45
      %s52 = sor.u32 %s50, %s51
      %p53 = scmp.eq.s32.totalorder %s52, 0
      %s55 = sadd.s32 %s54, 1
      %s56 = scalar_select %p53, %s54, %s55
      %p59 = pneg %p53
      %p60 = scmp.eq.s32.totalorder %s30, 3
      %p61 = por %p59, %p60
      %p62 = scmp.ne.s32.totalorder %s54, %s57
      %p63 = scmp.eq.s32.totalorder %s30, 0
      %p64 = por %p62, %p63
      %p65 = scmp.ne.s32.totalorder %s54, %s57
      %p66 = scmp.eq.s32.totalorder %s35, 3
      %p67 = por %p65, %p66
      %p68 = scmp.ne.s32.totalorder %s57, %s58
      %p69 = scmp.eq.s32.totalorder %s35, 0
      %p70 = por %p68, %p69
      %p71 = scmp.ne.s32.totalorder %s57, %s58
      %p72 = scmp.eq.s32.totalorder %s36, 3
      %p73 = por %p71, %p72
      %p75 = scmp.ne.s32.totalorder %s58, %s74
      %p76 = scmp.eq.s32.totalorder %s36, 0
      %p77 = por %p75, %p76
      %s78 = ssub.s32 %s38, %s45
      %p79 = scmp.eq.s32.totalorder %s78, 0
      %s81 = sadd.s32 %s80, 1
      %s82 = scalar_select %p79, %s80, %s81
      %p85 = pneg %p79
      %p86 = scmp.eq.s32.totalorder %s30, 3
      %p87 = por %p85, %p86
      %p88 = scmp.ne.s32.totalorder %s80, %s83
      %p89 = scmp.eq.s32.totalorder %s30, 0
      %p90 = por %p88, %p89
      %p91 = scmp.ne.s32.totalorder %s80, %s83
      %p92 = scmp.eq.s32.totalorder %s35, 3
      %p93 = por %p91, %p92
      %p94 = scmp.ne.s32.totalorder %s83, %s84
      %p95 = scmp.eq.s32.totalorder %s35, 0
      %p96 = por %p94, %p95
      %p97 = scmp.ne.s32.totalorder %s83, %s84
      %p98 = scmp.eq.s32.totalorder %s36, 3
      %p99 = por %p97, %p98
      %p101 = scmp.ne.s32.totalorder %s84, %s100
      %p102 = scmp.eq.s32.totalorder %s36, 0
      %p103 = por %p101, %p102
      %s104 = ssub.s32 %s37, %s49
      %p105 = scmp.eq.s32.totalorder %s104, 0
      %s107 = sadd.s32 %s106, 1
      %s108 = scalar_select %p105, %s106, %s107
      %p111 = pneg %p105
      %p112 = scmp.eq.s32.totalorder %s30, 3
      %p113 = por %p111, %p112
      %p114 = scmp.ne.s32.totalorder %s106, %s109
      %p115 = scmp.eq.s32.totalorder %s30, 0
      %p116 = por %p114, %p115
      %p117 = scmp.ne.s32.totalorder %s106, %s109
      %p118 = scmp.eq.s32.totalorder %s35, 3
      %p119 = por %p117, %p118
      %p120 = scmp.ne.s32.totalorder %s109, %s110
      %p121 = scmp.eq.s32.totalorder %s35, 0
      %p122 = por %p120, %p121
      %p123 = scmp.ne.s32.totalorder %s109, %s110
      %p124 = scmp.eq.s32.totalorder %s36, 3
      %p125 = por %p123, %p124
      %p127 = scmp.ne.s32.totalorder %s110, %s126
      %p128 = scmp.eq.s32.totalorder %s36, 0
      %p129 = por %p127, %p128
      %s130 = ssub.s32 %s37, %s49
      %p131 = scmp.eq.s32.totalorder %s130, 0
      %s133 = sadd.s32 %s132, 1
      %s134 = scalar_select %p131, %s132, %s133
      %p137 = pneg %p131
      %p138 = scmp.eq.s32.totalorder %s30, 3
      %p139 = por %p137, %p138
      %p140 = scmp.ne.s32.totalorder %s132, %s135
      %p141 = scmp.eq.s32.totalorder %s30, 0
      %p142 = por %p140, %p141
      %p143 = scmp.ne.s32.totalorder %s132, %s135
      %p144 = scmp.eq.s32.totalorder %s35, 3
      %p145 = por %p143, %p144
      %p146 = scmp.ne.s32.totalorder %s135, %s136
      %p147 = scmp.eq.s32.totalorder %s35, 0
      %p148 = por %p146, %p147
      %p149 = scmp.ne.s32.totalorder %s135, %s136
      %p150 = scmp.eq.s32.totalorder %s36, 3
      %p151 = por %p149, %p150
      %p153 = scmp.ne.s32.totalorder %s136, %s152
      %p154 = scmp.eq.s32.totalorder %s36, 0
      %p155 = por %p153, %p154
      %s157 = sadd.s32 %s156, 1
      %p160 = scmp.eq.s32.totalorder %s30, 3
      %p161 = scmp.ne.s32.totalorder %s156, %s158
      %p162 = scmp.eq.s32.totalorder %s30, 0
      %p163 = por %p161, %p162
      %p164 = scmp.ne.s32.totalorder %s156, %s158
      %p165 = scmp.eq.s32.totalorder %s35, 3
      %p166 = por %p164, %p165
      %p167 = scmp.ne.s32.totalorder %s158, %s159
      %p168 = scmp.eq.s32.totalorder %s35, 0
      %p169 = por %p167, %p168
      %p170 = scmp.ne.s32.totalorder %s158, %s159
      %p171 = scmp.eq.s32.totalorder %s36, 3
      %p172 = por %p170, %p171
      %p174 = scmp.ne.s32.totalorder %s159, %s173
      %p175 = scmp.eq.s32.totalorder %s36, 0
      %p176 = por %p174, %p175
      %s178 = sadd.s32 %s177, 1
      %p181 = scmp.eq.s32.totalorder %s30, 3
      %p182 = scmp.ne.s32.totalorder %s177, %s179
      %p183 = scmp.eq.s32.totalorder %s30, 0
      %p184 = por %p182, %p183
      %p185 = scmp.ne.s32.totalorder %s177, %s179
      %p186 = scmp.eq.s32.totalorder %s35, 3
      %p187 = por %p185, %p186
      %p188 = scmp.ne.s32.totalorder %s179, %s180
      %p189 = scmp.eq.s32.totalorder %s35, 0
      %p190 = por %p188, %p189
      %p191 = scmp.ne.s32.totalorder %s179, %s180
      %p192 = scmp.eq.s32.totalorder %s36, 3
      %p193 = por %p191, %p192
      %p195 = scmp.ne.s32.totalorder %s180, %s194
      %p196 = scmp.eq.s32.totalorder %s36, 0
      %p197 = por %p195, %p196
      %s199 = sadd.s32 %s198, 1
      %p202 = scmp.eq.s32.totalorder %s30, 3
      %p203 = scmp.ne.s32.totalorder %s198, %s200
      %p204 = scmp.eq.s32.totalorder %s30, 0
      %p205 = por %p203, %p204
      %p206 = scmp.ne.s32.totalorder %s198, %s200
      %p207 = scmp.eq.s32.totalorder %s35, 3
      %p208 = por %p206, %p207
      %p209 = scmp.ne.s32.totalorder %s200, %s201
      %p210 = scmp.eq.s32.totalorder %s35, 0
      %p211 = por %p209, %p210
      %p212 = scmp.ne.s32.totalorder %s200, %s201
      %p213 = scmp.eq.s32.totalorder %s36, 3
      %p214 = por %p212, %p213
      %p216 = scmp.ne.s32.totalorder %s201, %s215
      %p217 = scmp.eq.s32.totalorder %s36, 0
      %p218 = por %p216, %p217
      %s219 = ssub.s32 %s37, %s49
      %p220 = scmp.eq.s32.totalorder %s219, 0
      %s222 = sadd.s32 %s221, 1
      %s223 = scalar_select %p220, %s221, %s222
      %p226 = pneg %p220
      %p227 = scmp.eq.s32.totalorder %s30, 3
      %p228 = por %p226, %p227
      %p229 = scmp.ne.s32.totalorder %s221, %s224
      %p230 = scmp.eq.s32.totalorder %s30, 0
      %p231 = por %p229, %p230
      %p232 = scmp.ne.s32.totalorder %s221, %s224
      %p233 = scmp.eq.s32.totalorder %s35, 3
      %p234 = por %p232, %p233
      %p235 = scmp.ne.s32.totalorder %s224, %s225
      %p236 = scmp.eq.s32.totalorder %s35, 0
      %p237 = por %p235, %p236
      %p238 = scmp.ne.s32.totalorder %s224, %s225
      %p239 = scmp.eq.s32.totalorder %s36, 3
      %p240 = por %p238, %p239
      %p242 = scmp.ne.s32.totalorder %s225, %s241
      %p243 = scmp.eq.s32.totalorder %s36, 0
      %p244 = por %p242, %p243
      %s245 = ssub.s32 %s37, %s49
      %p246 = scmp.eq.s32.totalorder %s245, 0
      %s248 = sadd.s32 %s247, 1
      %s249 = scalar_select %p246, %s247, %s248
      %p252 = pneg %p246
      %p253 = scmp.eq.s32.totalorder %s30, 3
      %p254 = por %p252, %p253
      %p255 = scmp.ne.s32.totalorder %s247, %s250
      %p256 = scmp.eq.s32.totalorder %s30, 0
      %p257 = por %p255, %p256
      %p258 = scmp.ne.s32.totalorder %s247, %s250
      %p259 = scmp.eq.s32.totalorder %s35, 3
      %p260 = por %p258, %p259
      %p261 = scmp.ne.s32.totalorder %s250, %s251
      %p262 = scmp.eq.s32.totalorder %s35, 0
      %p263 = por %p261, %p262
      %p264 = scmp.ne.s32.totalorder %s250, %s251
      %p265 = scmp.eq.s32.totalorder %s36, 3
      %p266 = por %p264, %p265
      %p268 = scmp.ne.s32.totalorder %s251, %s267
      %p269 = scmp.eq.s32.totalorder %s36, 0
      %p270 = por %p268, %p269
      %p271 = scmp.le.s32.totalorder 1, %s30
      %p272 = scmp.lt.s32.totalorder %s30, 5
      %p273 = pnand %p271, %p272
      %p274 = pneg %p273
      // Predicated region
      $region9: #{tpu_custom_call.1} parent=5 // pred_check
        _
      $region10: #{tpu_custom_call.1} parent=5 // pred_check_branch
        %276 = sbr.rel (%p273) target = $region12
      $region11: #{tpu_custom_call.1} parent=5 // pred_region
        %s277 = ssub.s32 %s30, 1
        // Predicated region
        $region13: #{tpu_custom_call.1} parent=11 // pred_check
          %p278 = pneg %p169
        $region14: #{tpu_custom_call.1} parent=11 // pred_check_branch
          %280 = sbr.rel (%p278) target = $region16
        $region15: #{tpu_custom_call.1} parent=11 // pred_region
          %s282 = ssub.s32 1024, 1024
          %283 = vsyncadd [#allocation10], %s282
          %s284 = sshll.u32 [#allocation11], 4
          %s285 = int_to_ptr.vmem [resolvable:$true] %s284
          %290 = dma.hbm_to_vmem [thread:$0]  %s4, 1024, %s285, [#allocation10], 64, 64, 4
        $region16: #{tpu_custom_call.1} parent=11 // pred_fallthru
          _
        // Predicated region
        $region17: #{tpu_custom_call.1} parent=11 // pred_check
          %p291 = pneg %p190
        $region18: #{tpu_custom_call.1} parent=11 // pred_check_branch
          %293 = sbr.rel (%p291) target = $region20
        $region19: #{tpu_custom_call.1} parent=11 // pred_region
          %s295 = ssub.s32 1024, 1024
          %296 = vsyncadd [#allocation13], %s295
          %s297 = sshll.u32 [#allocation12], 4
          %s298 = int_to_ptr.vmem [resolvable:$true] %s297
          %303 = dma.hbm_to_vmem [thread:$0]  %s5, 1024, %s298, [#allocation13], 64, 64, 4
        $region20: #{tpu_custom_call.1} parent=11 // pred_fallthru
          _
        // Predicated region
        $region21: #{tpu_custom_call.1} parent=11 // pred_check
          %p304 = pneg %p211
        $region22: #{tpu_custom_call.1} parent=11 // pred_check_branch
          %306 = sbr.rel (%p304) target = $region24
        $region23: #{tpu_custom_call.1} parent=11 // pred_region
          %s308 = ssub.s32 1024, 1024
          %309 = vsyncadd [#allocation13], %s308
          %s310 = sshll.u32 [#allocation14], 4
          %s311 = int_to_ptr.vmem [resolvable:$true] %s310
          %316 = dma.hbm_to_vmem [thread:$0]  %s6, 1024, %s311, [#allocation13], 64, 64, 4
        $region24: #{tpu_custom_call.1} parent=11 // pred_fallthru
          _
      $region12: #{tpu_custom_call.1} parent=5 // pred_fallthru
        _
      %p317 = scmp.lt.s32.totalorder %s30, 4
      // Predicated region
      $region25: #{tpu_custom_call.1} parent=5 // pred_check
        %p318 = pneg %p317
      $region26: #{tpu_custom_call.1} parent=5 // pred_check_branch
        %320 = sbr.rel (%p318) target = $region28
      $region27: #{tpu_custom_call.1} parent=5 // pred_region
        // Predicated region
        $region29: #{tpu_custom_call.1} parent=27 // pred_check
          %p321 = pneg %p64
        $region30: #{tpu_custom_call.1} parent=27 // pred_check_branch
          %323 = sbr.rel (%p321) target = $region32
        $region31: #{tpu_custom_call.1} parent=27 // pred_region
          %s324 = sand.u32 %s54, 1
          %s325 = scalar_lea.sflag [#allocation4], %s324
          %s326 = sand.u32 %s54, 1
          %s327 = smul.addr %s326, 64
          %s328 = scalar_lea.vmem [#allocation3], %s327
          %s329 = smul.u32 16, %s37
          %s331 = ssub.s32 1024, 1024
          %332 = vsyncadd %s325, %s331
          %s333 = smul.addr %s329, 2
          %s334 = sadd.s32 %s38, %s333
          %s335 = smul.addr %s334, 64
          %s336 = scalar_lea.hbm %s0, %s335
          %s337 = sshll.u32 %s328, 4
          %s338 = int_to_ptr.vmem [resolvable:$true] %s337
          %343 = dma.hbm_to_vmem [thread:$0]  %s336, 1024, %s338, %s325, 128, 64, 4
        $region32: #{tpu_custom_call.1} parent=27 // pred_fallthru
          _
        // Predicated region
        $region33: #{tpu_custom_call.1} parent=27 // pred_check
          %p344 = pneg %p90
        $region34: #{tpu_custom_call.1} parent=27 // pred_check_branch
          %346 = sbr.rel (%p344) target = $region36
        $region35: #{tpu_custom_call.1} parent=27 // pred_region
          %s347 = sand.u32 %s30, 1
          %s348 = scalar_lea.sflag [#allocation7], %s347
          %s349 = sand.u32 %s80, 1
          %s350 = smul.addr %s349, 64
          %s351 = scalar_lea.vmem [#allocation6], %s350
          %s352 = smul.u32 16, %s38
          %s354 = ssub.s32 1024, 1024
          %355 = vsyncadd %s348, %s354
          %s356 = smul.addr %s352, 64
          %s357 = scalar_lea.hbm %s1, %s356
          %s358 = sshll.u32 %s351, 4
          %s359 = int_to_ptr.vmem [resolvable:$true] %s358
          %364 = dma.hbm_to_vmem [thread:$0]  %s357, 1024, %s359, %s348, 64, 64, 4
        $region36: #{tpu_custom_call.1} parent=27 // pred_fallthru
          _
        // Predicated region
        $region37: #{tpu_custom_call.1} parent=27 // pred_check
          %p365 = pneg %p116
        $region38: #{tpu_custom_call.1} parent=27 // pred_check_branch
          %367 = sbr.rel (%p365) target = $region40
        $region39: #{tpu_custom_call.1} parent=27 // pred_region
          %s368 = sand.u32 %s30, 1
          %s369 = scalar_lea.sflag [#allocation7], %s368
          %s370 = sand.u32 %s106, 1
          %s371 = smul.addr %s370, 64
          %s372 = scalar_lea.vmem [#allocation8], %s371
          %s373 = smul.u32 16, %s37
          %s375 = ssub.s32 1024, 1024
          %376 = vsyncadd %s369, %s375
          %s377 = smul.addr %s373, 64
          %s378 = scalar_lea.hbm %s2, %s377
          %s379 = sshll.u32 %s372, 4
          %s380 = int_to_ptr.vmem [resolvable:$true] %s379
          %385 = dma.hbm_to_vmem [thread:$0]  %s378, 1024, %s380, %s369, 64, 64, 4
        $region40: #{tpu_custom_call.1} parent=27 // pred_fallthru
          _
        // Predicated region
        $region41: #{tpu_custom_call.1} parent=27 // pred_check
          %p386 = pneg %p142
        $region42: #{tpu_custom_call.1} parent=27 // pred_check_branch
          %388 = sbr.rel (%p386) target = $region44
        $region43: #{tpu_custom_call.1} parent=27 // pred_region
          %s389 = sand.u32 %s30, 1
          %s390 = scalar_lea.sflag [#allocation10], %s389
          %s391 = sand.u32 %s132, 1
          %s392 = smul.addr %s391, 64
          %s393 = scalar_lea.vmem [#allocation9], %s392
          %s394 = smul.u32 16, %s37
          %s396 = ssub.s32 1024, 1024
          %397 = vsyncadd %s390, %s396
          %s398 = smul.addr %s394, 64
          %s399 = scalar_lea.hbm %s3, %s398
          %s400 = sshll.u32 %s393, 4
          %s401 = int_to_ptr.vmem [resolvable:$true] %s400
          %406 = dma.hbm_to_vmem [thread:$0]  %s399, 1024, %s401, %s390, 64, 64, 4
        $region44: #{tpu_custom_call.1} parent=27 // pred_fallthru
          _
        // Predicated region
        $region45: #{tpu_custom_call.1} parent=27 // pred_check
          %p407 = pneg %p231
        $region46: #{tpu_custom_call.1} parent=27 // pred_check_branch
          %409 = sbr.rel (%p407) target = $region48
        $region47: #{tpu_custom_call.1} parent=27 // pred_region
          %s410 = sand.u32 %s221, 1
          %s411 = scalar_lea.sflag [#allocation16], %s410
          %s412 = sand.u32 %s221, 1
          %s413 = smul.addr %s412, 128
          %s414 = scalar_lea.vmem [#allocation15], %s413
          %s415 = smul.u32 16, %s37
          %s417 = ssub.s32 2048, 2048
          %418 = vsyncadd %s411, %s417
          %s419 = smul.addr %s415, 128
          %s420 = scalar_lea.hbm %s7, %s419
          %s421 = sshll.u32 %s414, 4
          %s422 = int_to_ptr.vmem [resolvable:$true] %s421
          %427 = dma.hbm_to_vmem [thread:$0]  %s420, 2048, %s422, %s411, 128, 128, 8
        $region48: #{tpu_custom_call.1} parent=27 // pred_fallthru
          _
      $region28: #{tpu_custom_call.1} parent=5 // pred_fallthru
        _
      %p428 = scmp.le.s32.totalorder 1, %s30
      %p429 = scmp.lt.s32.totalorder %s30, 5
      %p430 = pnand %p428, %p429
      %p431 = pneg %p430
      // Predicated region
      $region49: #{tpu_custom_call.1} parent=5 // pred_check
        _
      $region50: #{tpu_custom_call.1} parent=5 // pred_check_branch
        %433 = sbr.rel (%p430) target = $region52
      $region51: #{tpu_custom_call.1} parent=5 // pred_region
        %s434 = ssub.s32 %s30, 1
        %s435 = sand.u32 %s57, 1
        %s436 = scalar_lea.sflag [#allocation4], %s435
        %s437 = sand.u32 %s57, 1
        %s438 = smul.addr %s437, 64
        %s439 = scalar_lea.vmem [#allocation3], %s438
        // Predicated region
        $region53: #{tpu_custom_call.1} parent=51 // pred_check
          %p440 = pneg %p70
        $region54: #{tpu_custom_call.1} parent=51 // pred_check_branch
          %442 = sbr.rel (%p440) target = $region56
        $region55: #{tpu_custom_call.1} parent=51 // pred_region
          %443 = dma.done %s436, 1024
        $region56: #{tpu_custom_call.1} parent=51 // pred_fallthru
          _
        %s444 = sand.u32 %s35, 1
        %s445 = scalar_lea.sflag [#allocation7], %s444
        %s446 = sand.u32 %s83, 1
        %s447 = smul.addr %s446, 64
        %s448 = scalar_lea.vmem [#allocation6], %s447
        // Predicated region
        $region57: #{tpu_custom_call.1} parent=51 // pred_check
          %p449 = pneg %p96
        $region58: #{tpu_custom_call.1} parent=51 // pred_check_branch
          %451 = sbr.rel (%p449) target = $region60
        $region59: #{tpu_custom_call.1} parent=51 // pred_region
          %452 = dma.done %s445, 1024
        $region60: #{tpu_custom_call.1} parent=51 // pred_fallthru
          _
        %s453 = sand.u32 %s35, 1
        %s454 = scalar_lea.sflag [#allocation7], %s453
        %s455 = sand.u32 %s109, 1
        %s456 = smul.addr %s455, 64
        %s457 = scalar_lea.vmem [#allocation8], %s456
        // Predicated region
        $region61: #{tpu_custom_call.1} parent=51 // pred_check
          %p458 = pneg %p122
        $region62: #{tpu_custom_call.1} parent=51 // pred_check_branch
          %460 = sbr.rel (%p458) target = $region64
        $region63: #{tpu_custom_call.1} parent=51 // pred_region
          %461 = dma.done %s454, 1024
        $region64: #{tpu_custom_call.1} parent=51 // pred_fallthru
          _
        %s462 = sand.u32 %s35, 1
        %s463 = scalar_lea.sflag [#allocation10], %s462
        %s464 = sand.u32 %s135, 1
        %s465 = smul.addr %s464, 64
        %s466 = scalar_lea.vmem [#allocation9], %s465
        // Predicated region
        $region65: #{tpu_custom_call.1} parent=51 // pred_check
          %p467 = pneg %p148
        $region66: #{tpu_custom_call.1} parent=51 // pred_check_branch
          %469 = sbr.rel (%p467) target = $region68
        $region67: #{tpu_custom_call.1} parent=51 // pred_region
          %470 = dma.done %s463, 1024
        $region68: #{tpu_custom_call.1} parent=51 // pred_fallthru
          _
        // Predicated region
        $region69: #{tpu_custom_call.1} parent=51 // pred_check
          %p471 = pneg %p169
        $region70: #{tpu_custom_call.1} parent=51 // pred_check_branch
          %473 = sbr.rel (%p471) target = $region72
        $region71: #{tpu_custom_call.1} parent=51 // pred_region
          %474 = dma.done [#allocation10], 1024
        $region72: #{tpu_custom_call.1} parent=51 // pred_fallthru
          _
        // Predicated region
        $region73: #{tpu_custom_call.1} parent=51 // pred_check
          %p475 = pneg %p190
        $region74: #{tpu_custom_call.1} parent=51 // pred_check_branch
          %477 = sbr.rel (%p475) target = $region76
        $region75: #{tpu_custom_call.1} parent=51 // pred_region
          %478 = dma.done [#allocation13], 1024
        $region76: #{tpu_custom_call.1} parent=51 // pred_fallthru
          _
        // Predicated region
        $region77: #{tpu_custom_call.1} parent=51 // pred_check
          %p479 = pneg %p211
        $region78: #{tpu_custom_call.1} parent=51 // pred_check_branch
          %481 = sbr.rel (%p479) target = $region80
        $region79: #{tpu_custom_call.1} parent=51 // pred_region
          %482 = dma.done [#allocation13], 1024
        $region80: #{tpu_custom_call.1} parent=51 // pred_fallthru
          _
        %s483 = sand.u32 %s224, 1
        %s484 = scalar_lea.sflag [#allocation16], %s483
        %s485 = sand.u32 %s224, 1
        %s486 = smul.addr %s485, 128
        %s487 = scalar_lea.vmem [#allocation15], %s486
        // Predicated region
        $region81: #{tpu_custom_call.1} parent=51 // pred_check
          %p488 = pneg %p237
        $region82: #{tpu_custom_call.1} parent=51 // pred_check_branch
          %490 = sbr.rel (%p488) target = $region84
        $region83: #{tpu_custom_call.1} parent=51 // pred_region
          %491 = dma.done %s484, 2048
        $region84: #{tpu_custom_call.1} parent=51 // pred_fallthru
          _
        %s492 = sand.u32 %s57, 1
        %s493 = scalar_lea.sflag [#allocation4], %s492
        %s494 = sand.u32 %s57, 1
        %s495 = smul.addr %s494, 64
        %s496 = scalar_lea.vmem [#allocation3], %s495
        %p497 = pneg %p70
        %p498 = pneg %p67
        %s499 = sand.u32 %s35, 1
        %s500 = scalar_lea.sflag [#allocation7], %s499
        %s501 = sand.u32 %s83, 1
        %s502 = smul.addr %s501, 64
        %s503 = scalar_lea.vmem [#allocation6], %s502
        %p504 = pneg %p96
        %p505 = pneg %p93
        %s506 = sand.u32 %s35, 1
        %s507 = scalar_lea.sflag [#allocation7], %s506
        %s508 = sand.u32 %s109, 1
        %s509 = smul.addr %s508, 64
        %s510 = scalar_lea.vmem [#allocation8], %s509
        %p511 = pneg %p122
        %p512 = pneg %p119
        %s513 = sand.u32 %s35, 1
        %s514 = scalar_lea.sflag [#allocation10], %s513
        %s515 = sand.u32 %s135, 1
        %s516 = smul.addr %s515, 64
        %s517 = scalar_lea.vmem [#allocation9], %s516
        %p518 = pneg %p148
        %p519 = pneg %p145
        %p520 = pneg %p169
        %p521 = pneg %p166
        %p522 = pneg %p190
        %p523 = pneg %p187
        %p524 = pneg %p211
        %p525 = pneg %p208
        %s526 = sand.u32 %s224, 1
        %s527 = scalar_lea.sflag [#allocation16], %s526
        %s528 = sand.u32 %s224, 1
        %s529 = smul.addr %s528, 128
        %s530 = scalar_lea.vmem [#allocation15], %s529
        %p531 = pneg %p237
        %p532 = pneg %p234
        %p533 = pneg %p263
        %p534 = pneg %p260
        %s535 = sand.u32 %s250, 1
        %s536 = scalar_lea.sflag [#allocation5], %s535
        %s537 = sand.u32 %s250, 1
        %s538 = smul.addr %s537, 64
        %s539 = scalar_lea.vmem [#allocation17], %s538
        %s540 = smul.u32 16, %s39
        %s541 = smul.u32 16, %s40
        %s542 = smul.u32 16, %s39
        %s543 = smul.u32 16, %s39
        %s544 = smul.u32 16, %s39
        %s545 = smul.u32 16, %s39
        %p547 = scmp.eq.s32.totalorder %s40, 0
        // Predicated region
        $region85: #{tpu_custom_call.1} parent=51 // pred_check
          %p548 = pneg %p547
        $region86: #{tpu_custom_call.1} parent=51 // pred_check_branch
          %550 = sbr.rel (%p548) target = $region88
        $region87: #{tpu_custom_call.1} parent=51 // pred_region
          %551 = vst [vmem:[#allocation2] sm:$0xff] 0.0
          %552 = vst [vmem:[#allocation2 + $0x8] sm:$0xff] 0.0
          %553 = vst [vmem:[#allocation2 + $0x10] sm:$0xff] 0.0
          %554 = vst [vmem:[#allocation2 + $0x18] sm:$0xff] 0.0
          %555 = vst [vmem:[#allocation2 + $0x20] sm:$0xff] 0.0
          %556 = vst [vmem:[#allocation2 + $0x28] sm:$0xff] 0.0
          %557 = vst [vmem:[#allocation2 + $0x30] sm:$0xff] 0.0
          %558 = vst [vmem:[#allocation2 + $0x38] sm:$0xff] 0.0
          %559 = vst [vmem:[#allocation2 + $0x40] sm:$0xff] 0.0
          %560 = vst [vmem:[#allocation2 + $0x48] sm:$0xff] 0.0
          %561 = vst [vmem:[#allocation2 + $0x50] sm:$0xff] 0.0
          %562 = vst [vmem:[#allocation2 + $0x58] sm:$0xff] 0.0
          %563 = vst [vmem:[#allocation2 + $0x60] sm:$0xff] 0.0
          %564 = vst [vmem:[#allocation2 + $0x68] sm:$0xff] 0.0
          %565 = vst [vmem:[#allocation2 + $0x70] sm:$0xff] 0.0
          %566 = vst [vmem:[#allocation2 + $0x78] sm:$0xff] 0.0
        $region88: #{tpu_custom_call.1} parent=51 // pred_fallthru
          _
        %v567 = vld [vmem:[%s448] sm:$0xf]
        %v568 = vld [vmem:[%s448 + $0x4] sm:$0xf]
        %v569 = vld [vmem:[%s448 + $0x8] sm:$0xf]
        %v570 = vld [vmem:[%s448 + $0xc] sm:$0xf]
        %v571 = vld [vmem:[%s448 + $0x10] sm:$0xf]
        %v572 = vld [vmem:[%s448 + $0x14] sm:$0xf]
        %v573 = vld [vmem:[%s448 + $0x18] sm:$0xf]
        %v574 = vld [vmem:[%s448 + $0x1c] sm:$0xf]
        %v575 = vld [vmem:[%s448 + $0x20] sm:$0xf]
        %v576 = vld [vmem:[%s448 + $0x24] sm:$0xf]
        %v577 = vld [vmem:[%s448 + $0x28] sm:$0xf]
        %v578 = vld [vmem:[%s448 + $0x2c] sm:$0xf]
        %v579 = vld [vmem:[%s448 + $0x30] sm:$0xf]
        %v580 = vld [vmem:[%s448 + $0x34] sm:$0xf]
        %v581 = vld [vmem:[%s448 + $0x38] sm:$0xf]
        %v582 = vld [vmem:[%s448 + $0x3c] sm:$0xf]
        %v583 = vld [vmem:[#allocation11] sm:$0xf]
        %v584 = vld [vmem:[#allocation11 + $0x4] sm:$0xf]
        %v585 = vld [vmem:[#allocation11 + $0x8] sm:$0xf]
        %v586 = vld [vmem:[#allocation11 + $0xc] sm:$0xf]
        %v587 = vld [vmem:[#allocation11 + $0x10] sm:$0xf]
        %v588 = vld [vmem:[#allocation11 + $0x14] sm:$0xf]
        %v589 = vld [vmem:[#allocation11 + $0x18] sm:$0xf]
        %v590 = vld [vmem:[#allocation11 + $0x1c] sm:$0xf]
        %v591 = vld [vmem:[#allocation11 + $0x20] sm:$0xf]
        %v592 = vld [vmem:[#allocation11 + $0x24] sm:$0xf]
        %v593 = vld [vmem:[#allocation11 + $0x28] sm:$0xf]
        %v594 = vld [vmem:[#allocation11 + $0x2c] sm:$0xf]
        %v595 = vld [vmem:[#allocation11 + $0x30] sm:$0xf]
        %v596 = vld [vmem:[#allocation11 + $0x34] sm:$0xf]
        %v597 = vld [vmem:[#allocation11 + $0x38] sm:$0xf]
        %v598 = vld [vmem:[#allocation11 + $0x3c] sm:$0xf]
        %v615 = vunpack.c.l.b16 %v567
        %v616 = vunpack.c.l.b16 %v568
        %v617 = vunpack.c.l.b16 %v569
        %v618 = vunpack.c.l.b16 %v570
        %v619 = vunpack.c.l.b16 %v571
        %v620 = vunpack.c.l.b16 %v572
        %v621 = vunpack.c.l.b16 %v573
        %v622 = vunpack.c.l.b16 %v574
        %v623 = vunpack.c.l.b16 %v575
        %v624 = vunpack.c.l.b16 %v576
        %v625 = vunpack.c.l.b16 %v577
        %v626 = vunpack.c.l.b16 %v578
        %v627 = vunpack.c.l.b16 %v579
        %v628 = vunpack.c.l.b16 %v580
        %v629 = vunpack.c.l.b16 %v581
        %v630 = vunpack.c.l.b16 %v582
        %v631 = vpack.c.b16 %v616, %v615
        %v632 = vpack.c.b16 %v618, %v617
        %v633 = vpack.c.b16 %v620, %v619
        %v634 = vpack.c.b16 %v622, %v621
        %v635 = vpack.c.b16 %v624, %v623
        %v636 = vpack.c.b16 %v626, %v625
        %v637 = vpack.c.b16 %v628, %v627
        %v638 = vpack.c.b16 %v630, %v629
        %v663 = vunpack.c.l.b16 %v583
        %v664 = vunpack.c.l.b16 %v584
        %v665 = vunpack.c.l.b16 %v585
        %v666 = vunpack.c.l.b16 %v586
        %v667 = vunpack.c.l.b16 %v587
        %v668 = vunpack.c.l.b16 %v588
        %v669 = vunpack.c.l.b16 %v589
        %v670 = vunpack.c.l.b16 %v590
        %v671 = vunpack.c.l.b16 %v591
        %v672 = vunpack.c.l.b16 %v592
        %v673 = vunpack.c.l.b16 %v593
        %v674 = vunpack.c.l.b16 %v594
        %v675 = vunpack.c.l.b16 %v595
        %v676 = vunpack.c.l.b16 %v596
        %v677 = vunpack.c.l.b16 %v597
        %v678 = vunpack.c.l.b16 %v598
        %v679 = vpack.c.b16 %v664, %v663
        %v680 = vpack.c.b16 %v666, %v665
        %v681 = vpack.c.b16 %v668, %v667
        %v682 = vpack.c.b16 %v670, %v669
        %v683 = vpack.c.b16 %v672, %v671
        %v684 = vpack.c.b16 %v674, %v673
        %v685 = vpack.c.b16 %v676, %v675
        %v686 = vpack.c.b16 %v678, %v677
        %695 = vmatprep.subr.bf16.mxu0 0
        %696 = vmatpush1.bf16.msra.mxu0 %v679
        %697 = vmatprep.subr.bf16.mxu0 0
        %698 = vmatpush1.bf16.msra.mxu0 %v680
        %699 = vmatprep.subr.bf16.mxu0 0
        %700 = vmatpush1.bf16.msra.mxu0 %v681
        %701 = vmatprep.subr.bf16.mxu0 0
        %702 = vmatpush1.bf16.msra.mxu0 %v682
        %703 = vmatprep.subr.bf16.mxu0 0
        %704 = vmatpush1.bf16.msra.mxu0 %v683
        %705 = vmatprep.subr.bf16.mxu0 0
        %706 = vmatpush1.bf16.msra.mxu0 %v684
        %707 = vmatprep.subr.bf16.mxu0 0
        %708 = vmatpush1.bf16.msra.mxu0 %v685
        %709 = vmatprep.subr.bf16.mxu0 0
        %710 = vmatpush1.bf16.msra.mxu0 %v686
        %711 = vmatprep.subr.bf16.mxu0 0
        %712 = vmatpush1.bf16.msra.mxu0 0
        %713 = vmatprep.subr.bf16.mxu0 0
        %714 = vmatpush1.bf16.msra.mxu0 0
        %715 = vmatprep.subr.bf16.mxu0 0
        %716 = vmatpush1.bf16.msra.mxu0 0
        %717 = vmatprep.subr.bf16.mxu0 0
        %718 = vmatpush1.bf16.msra.mxu0 0
        %719 = vmatprep.subr.bf16.mxu0 0
        %720 = vmatpush1.bf16.msra.mxu0 0
        %721 = vmatprep.subr.bf16.mxu0 0
        %722 = vmatpush1.bf16.msra.mxu0 0
        %723 = vmatprep.subr.bf16.mxu0 0
        %724 = vmatpush1.bf16.msra.mxu0 0
        %725 = vmatprep.subr.bf16.mxu0 0
        %726 = vmatpush1.bf16.msra.mxu0 0
        %727 = vmatprep.mubr.bf16.mxu0 0
        %728 = vmatmul.mubr.bf16.gmra.mrb[0].mxu0 %v631
        %v729 = vpop.f32.mrb[0].mxu0
        %v730 = vadd.f32 0.0, %v729
        %v731 = vpop.f32.mrb[0].mxu0
        %v732 = vpop.f32.mrb[0].mxu0
        %v733 = vadd.f32 0.0, %v732
        %v734 = vpop.f32.mrb[0].mxu0
        %735 = vmatprep.mubr.bf16.mxu0 0
        %736 = vmatmul.mubr.bf16.gmra.mrb[0].mxu0 %v632
        %v737 = vpop.f32.mrb[0].mxu0
        %v738 = vadd.f32 0.0, %v737
        %v739 = vpop.f32.mrb[0].mxu0
        %v740 = vpop.f32.mrb[0].mxu0
        %v741 = vadd.f32 0.0, %v740
        %v742 = vpop.f32.mrb[0].mxu0
        %743 = vmatprep.mubr.bf16.mxu0 0
        %744 = vmatmul.mubr.bf16.gmra.mrb[0].mxu0 %v633
        %v745 = vpop.f32.mrb[0].mxu0
        %v746 = vadd.f32 0.0, %v745
        %v747 = vpop.f32.mrb[0].mxu0
        %v748 = vpop.f32.mrb[0].mxu0
        %v749 = vadd.f32 0.0, %v748
        %v750 = vpop.f32.mrb[0].mxu0
        %751 = vmatprep.mubr.bf16.mxu0 0
        %752 = vmatmul.mubr.bf16.gmra.mrb[0].mxu0 %v634
        %v753 = vpop.f32.mrb[0].mxu0
        %v754 = vadd.f32 0.0, %v753
        %v755 = vpop.f32.mrb[0].mxu0
        %v756 = vpop.f32.mrb[0].mxu0
        %v757 = vadd.f32 0.0, %v756
        %v758 = vpop.f32.mrb[0].mxu0
        %759 = vmatprep.mubr.bf16.mxu0 0
        %760 = vmatmul.mubr.bf16.gmra.mrb[0].mxu0 %v635
        %v761 = vpop.f32.mrb[0].mxu0
        %v762 = vadd.f32 0.0, %v761
        %v763 = vpop.f32.mrb[0].mxu0
        %v764 = vpop.f32.mrb[0].mxu0
        %v765 = vadd.f32 0.0, %v764
        %v766 = vpop.f32.mrb[0].mxu0
        %767 = vmatprep.mubr.bf16.mxu0 0
        %768 = vmatmul.mubr.bf16.gmra.mrb[0].mxu0 %v636
        %v769 = vpop.f32.mrb[0].mxu0
        %v770 = vadd.f32 0.0, %v769
        %v771 = vpop.f32.mrb[0].mxu0
        %v772 = vpop.f32.mrb[0].mxu0
        %v773 = vadd.f32 0.0, %v772
        %v774 = vpop.f32.mrb[0].mxu0
        %775 = vmatprep.mubr.bf16.mxu0 0
        %776 = vmatmul.mubr.bf16.gmra.mrb[0].mxu0 %v637
        %v777 = vpop.f32.mrb[0].mxu0
        %v778 = vadd.f32 0.0, %v777
        %v779 = vpop.f32.mrb[0].mxu0
        %v780 = vpop.f32.mrb[0].mxu0
        %v781 = vadd.f32 0.0, %v780
        %v782 = vpop.f32.mrb[0].mxu0
        %783 = vmatprep.mubr.bf16.mxu0 0
        %784 = vmatmul.mubr.bf16.gmra.mrb[0].mxu0 %v638
        %v785 = vpop.f32.mrb[0].mxu0
        %v786 = vadd.f32 0.0, %v785
        %v787 = vpop.f32.mrb[0].mxu0
        %v788 = vpop.f32.mrb[0].mxu0
        %v789 = vadd.f32 0.0, %v788
        %v790 = vpop.f32.mrb[0].mxu0
        %791 = vdwg.mxu0
        %v792 = vld [vmem:[#allocation2] sm:$0xff]
        %v793 = vld [vmem:[#allocation2 + $0x8] sm:$0xff]
        %v794 = vld [vmem:[#allocation2 + $0x10] sm:$0xff]
        %v795 = vld [vmem:[#allocation2 + $0x18] sm:$0xff]
        %v796 = vld [vmem:[#allocation2 + $0x20] sm:$0xff]
        %v797 = vld [vmem:[#allocation2 + $0x28] sm:$0xff]
        %v798 = vld [vmem:[#allocation2 + $0x30] sm:$0xff]
        %v799 = vld [vmem:[#allocation2 + $0x38] sm:$0xff]
        %v800 = vld [vmem:[#allocation2 + $0x40] sm:$0xff]
        %v801 = vld [vmem:[#allocation2 + $0x48] sm:$0xff]
        %v802 = vld [vmem:[#allocation2 + $0x50] sm:$0xff]
        %v803 = vld [vmem:[#allocation2 + $0x58] sm:$0xff]
        %v804 = vld [vmem:[#allocation2 + $0x60] sm:$0xff]
        %v805 = vld [vmem:[#allocation2 + $0x68] sm:$0xff]
        %v806 = vld [vmem:[#allocation2 + $0x70] sm:$0xff]
        %v807 = vld [vmem:[#allocation2 + $0x78] sm:$0xff]
        %v808 = vld [vmem:[%s439] sm:$0xf]
        %v809 = vld [vmem:[%s439 + $0x4] sm:$0xf]
        %v810 = vld [vmem:[%s439 + $0x8] sm:$0xf]
        %v811 = vld [vmem:[%s439 + $0xc] sm:$0xf]
        %v812 = vld [vmem:[%s439 + $0x10] sm:$0xf]
        %v813 = vld [vmem:[%s439 + $0x14] sm:$0xf]
        %v814 = vld [vmem:[%s439 + $0x18] sm:$0xf]
        %v815 = vld [vmem:[%s439 + $0x1c] sm:$0xf]
        %v816 = vld [vmem:[%s439 + $0x20] sm:$0xf]
        %v817 = vld [vmem:[%s439 + $0x24] sm:$0xf]
        %v818 = vld [vmem:[%s439 + $0x28] sm:$0xf]
        %v819 = vld [vmem:[%s439 + $0x2c] sm:$0xf]
        %v820 = vld [vmem:[%s439 + $0x30] sm:$0xf]
        %v821 = vld [vmem:[%s439 + $0x34] sm:$0xf]
        %v822 = vld [vmem:[%s439 + $0x38] sm:$0xf]
        %v823 = vld [vmem:[%s439 + $0x3c] sm:$0xf]
        %v824 = vpack.c.bf16 %v733, %v730
        %v825 = vpack.c.bf16 %v741, %v738
        %v826 = vpack.c.bf16 %v749, %v746
        %v827 = vpack.c.bf16 %v757, %v754
        %v828 = vpack.c.bf16 %v765, %v762
        %v829 = vpack.c.bf16 %v773, %v770
        %v830 = vpack.c.bf16 %v781, %v778
        %v831 = vpack.c.bf16 %v789, %v786
        %v848 = vunpack.c.l.b16 %v808
        %v849 = vunpack.c.l.b16 %v809
        %v850 = vunpack.c.l.b16 %v810
        %v851 = vunpack.c.l.b16 %v811
        %v852 = vunpack.c.l.b16 %v812
        %v853 = vunpack.c.l.b16 %v813
        %v854 = vunpack.c.l.b16 %v814
        %v855 = vunpack.c.l.b16 %v815
        %v856 = vunpack.c.l.b16 %v816
        %v857 = vunpack.c.l.b16 %v817
        %v858 = vunpack.c.l.b16 %v818
        %v859 = vunpack.c.l.b16 %v819
        %v860 = vunpack.c.l.b16 %v820
        %v861 = vunpack.c.l.b16 %v821
        %v862 = vunpack.c.l.b16 %v822
        %v863 = vunpack.c.l.b16 %v823
        %v864 = vpack.c.b16 %v849, %v848
        %v865 = vpack.c.b16 %v851, %v850
        %v866 = vpack.c.b16 %v853, %v852
        %v867 = vpack.c.b16 %v855, %v854
        %v868 = vpack.c.b16 %v857, %v856
        %v869 = vpack.c.b16 %v859, %v858
        %v870 = vpack.c.b16 %v861, %v860
        %v871 = vpack.c.b16 %v863, %v862
        %880 = vmatprep.subr.bf16.mxu0 0
        %881 = vmatpush1.bf16.msra.mxu0 %v824
        %882 = vmatprep.subr.bf16.mxu0 0
        %883 = vmatpush1.bf16.msra.mxu0 %v825
        %884 = vmatprep.subr.bf16.mxu0 0
        %885 = vmatpush1.bf16.msra.mxu0 %v826
        %886 = vmatprep.subr.bf16.mxu0 0
        %887 = vmatpush1.bf16.msra.mxu0 %v827
        %888 = vmatprep.subr.bf16.mxu0 0
        %889 = vmatpush1.bf16.msra.mxu0 %v828
        %890 = vmatprep.subr.bf16.mxu0 0
        %891 = vmatpush1.bf16.msra.mxu0 %v829
        %892 = vmatprep.subr.bf16.mxu0 0
        %893 = vmatpush1.bf16.msra.mxu0 %v830
        %894 = vmatprep.subr.bf16.mxu0 0
        %895 = vmatpush1.bf16.msra.mxu0 %v831
        %896 = vmatprep.subr.bf16.mxu0 0
        %897 = vmatpush1.bf16.msra.mxu0 0
        %898 = vmatprep.subr.bf16.mxu0 0
        %899 = vmatpush1.bf16.msra.mxu0 0
        %900 = vmatprep.subr.bf16.mxu0 0
        %901 = vmatpush1.bf16.msra.mxu0 0
        %902 = vmatprep.subr.bf16.mxu0 0
        %903 = vmatpush1.bf16.msra.mxu0 0
        %904 = vmatprep.subr.bf16.mxu0 0
        %905 = vmatpush1.bf16.msra.mxu0 0
        %906 = vmatprep.subr.bf16.mxu0 0
        %907 = vmatpush1.bf16.msra.mxu0 0
        %908 = vmatprep.subr.bf16.mxu0 0
        %909 = vmatpush1.bf16.msra.mxu0 0
        %910 = vmatprep.subr.bf16.mxu0 0
        %911 = vmatpush1.bf16.msra.mxu0 0
        %912 = vmatprep.mubr.bf16.mxu0 0
        %913 = vmatmul.mubr.bf16.gmra.mrb[0].mxu0 %v864
        %v914 = vpop.f32.mrb[0].mxu0
        %v915 = vadd.f32 0.0, %v914
        %v916 = vpop.f32.mrb[0].mxu0
        %v917 = vpop.f32.mrb[0].mxu0
        %v918 = vadd.f32 0.0, %v917
        %v919 = vpop.f32.mrb[0].mxu0
        %920 = vmatprep.mubr.bf16.mxu0 0
        %921 = vmatmul.mubr.bf16.gmra.mrb[0].mxu0 %v865
        %v922 = vpop.f32.mrb[0].mxu0
        %v923 = vadd.f32 0.0, %v922
        %v924 = vpop.f32.mrb[0].mxu0
        %v925 = vpop.f32.mrb[0].mxu0
        %v926 = vadd.f32 0.0, %v925
        %v927 = vpop.f32.mrb[0].mxu0
        %928 = vmatprep.mubr.bf16.mxu0 0
        %929 = vmatmul.mubr.bf16.gmra.mrb[0].mxu0 %v866
        %v930 = vpop.f32.mrb[0].mxu0
        %v931 = vadd.f32 0.0, %v930
        %v932 = vpop.f32.mrb[0].mxu0
        %v933 = vpop.f32.mrb[0].mxu0
        %v934 = vadd.f32 0.0, %v933
        %v935 = vpop.f32.mrb[0].mxu0
        %936 = vmatprep.mubr.bf16.mxu0 0
        %937 = vmatmul.mubr.bf16.gmra.mrb[0].mxu0 %v867
        %v938 = vpop.f32.mrb[0].mxu0
        %v939 = vadd.f32 0.0, %v938
        %v940 = vpop.f32.mrb[0].mxu0
        %v941 = vpop.f32.mrb[0].mxu0
        %v942 = vadd.f32 0.0, %v941
        %v943 = vpop.f32.mrb[0].mxu0
        %944 = vmatprep.mubr.bf16.mxu0 0
        %945 = vmatmul.mubr.bf16.gmra.mrb[0].mxu0 %v868
        %v946 = vpop.f32.mrb[0].mxu0
        %v947 = vadd.f32 0.0, %v946
        %v948 = vpop.f32.mrb[0].mxu0
        %v949 = vpop.f32.mrb[0].mxu0
        %v950 = vadd.f32 0.0, %v949
        %v951 = vpop.f32.mrb[0].mxu0
        %952 = vmatprep.mubr.bf16.mxu0 0
        %953 = vmatmul.mubr.bf16.gmra.mrb[0].mxu0 %v869
        %v954 = vpop.f32.mrb[0].mxu0
        %v955 = vadd.f32 0.0, %v954
        %v956 = vpop.f32.mrb[0].mxu0
        %v957 = vpop.f32.mrb[0].mxu0
        %v958 = vadd.f32 0.0, %v957
        %v959 = vpop.f32.mrb[0].mxu0
        %960 = vmatprep.mubr.bf16.mxu0 0
        %961 = vmatmul.mubr.bf16.gmra.mrb[0].mxu0 %v870
        %v962 = vpop.f32.mrb[0].mxu0
        %v963 = vadd.f32 0.0, %v962
        %v964 = vpop.f32.mrb[0].mxu0
        %v965 = vpop.f32.mrb[0].mxu0
        %v966 = vadd.f32 0.0, %v965
        %v967 = vpop.f32.mrb[0].mxu0
        %968 = vmatprep.mubr.bf16.mxu0 0
        %969 = vmatmul.mubr.bf16.gmra.mrb[0].mxu0 %v871
        %v970 = vpop.f32.mrb[0].mxu0
        %v971 = vadd.f32 0.0, %v970
        %v972 = vpop.f32.mrb[0].mxu0
        %v973 = vpop.f32.mrb[0].mxu0
        %v974 = vadd.f32 0.0, %v973
        %v975 = vpop.f32.mrb[0].mxu0
        %976 = vdwg.mxu0
        %v977 = vadd.f32 %v792, %v915
        %v978 = vadd.f32 %v793, %v918
        %v979 = vadd.f32 %v794, %v923
        %v980 = vadd.f32 %v795, %v926
        %v981 = vadd.f32 %v796, %v931
        %v982 = vadd.f32 %v797, %v934
        %v983 = vadd.f32 %v798, %v939
        %v984 = vadd.f32 %v799, %v942
        %v985 = vadd.f32 %v800, %v947
        %v986 = vadd.f32 %v801, %v950
        %v987 = vadd.f32 %v802, %v955
        %v988 = vadd.f32 %v803, %v958
        %v989 = vadd.f32 %v804, %v963
        %v990 = vadd.f32 %v805, %v966
        %v991 = vadd.f32 %v806, %v971
        %v992 = vadd.f32 %v807, %v974
        %993 = vst [vmem:[#allocation2] sm:$0xff] %v977
        %994 = vst [vmem:[#allocation2 + $0x8] sm:$0xff] %v978
        %995 = vst [vmem:[#allocation2 + $0x10] sm:$0xff] %v979
        %996 = vst [vmem:[#allocation2 + $0x18] sm:$0xff] %v980
        %997 = vst [vmem:[#allocation2 + $0x20] sm:$0xff] %v981
        %998 = vst [vmem:[#allocation2 + $0x28] sm:$0xff] %v982
        %999 = vst [vmem:[#allocation2 + $0x30] sm:$0xff] %v983
        %1000 = vst [vmem:[#allocation2 + $0x38] sm:$0xff] %v984
        %1001 = vst [vmem:[#allocation2 + $0x40] sm:$0xff] %v985
        %1002 = vst [vmem:[#allocation2 + $0x48] sm:$0xff] %v986
        %1003 = vst [vmem:[#allocation2 + $0x50] sm:$0xff] %v987
        %1004 = vst [vmem:[#allocation2 + $0x58] sm:$0xff] %v988
        %1005 = vst [vmem:[#allocation2 + $0x60] sm:$0xff] %v989
        %1006 = vst [vmem:[#allocation2 + $0x68] sm:$0xff] %v990
        %1007 = vst [vmem:[#allocation2 + $0x70] sm:$0xff] %v991
        %1008 = vst [vmem:[#allocation2 + $0x78] sm:$0xff] %v992
        %p1009 = scmp.eq.s32.totalorder %s40, 1
        // Predicated region
        $region89: #{tpu_custom_call.1} parent=51 // pred_check
          %p1010 = pneg %p1009
        $region90: #{tpu_custom_call.1} parent=51 // pred_check_branch
          %1012 = sbr.rel (%p1010) target = $region92
        $region91: #{tpu_custom_call.1} parent=51 // pred_region
          %v1013 = vld [vmem:[%s466] sm:$0xf]
          %v1014 = vld [vmem:[%s466 + $0x4] sm:$0xf]
          %v1015 = vld [vmem:[%s466 + $0x8] sm:$0xf]
          %v1016 = vld [vmem:[%s466 + $0xc] sm:$0xf]
          %v1017 = vld [vmem:[%s466 + $0x10] sm:$0xf]
          %v1018 = vld [vmem:[%s466 + $0x14] sm:$0xf]
          %v1019 = vld [vmem:[%s466 + $0x18] sm:$0xf]
          %v1020 = vld [vmem:[%s466 + $0x1c] sm:$0xf]
          %v1021 = vld [vmem:[%s466 + $0x20] sm:$0xf]
          %v1022 = vld [vmem:[%s466 + $0x24] sm:$0xf]
          %v1023 = vld [vmem:[%s466 + $0x28] sm:$0xf]
          %v1024 = vld [vmem:[%s466 + $0x2c] sm:$0xf]
          %v1025 = vld [vmem:[%s466 + $0x30] sm:$0xf]
          %v1026 = vld [vmem:[%s466 + $0x34] sm:$0xf]
          %v1027 = vld [vmem:[%s466 + $0x38] sm:$0xf]
          %v1028 = vld [vmem:[%s466 + $0x3c] sm:$0xf]
          %v1029 = vld [vmem:[#allocation12] sm:$0xf]
          %v1030 = vld [vmem:[#allocation12 + $0x4] sm:$0xf]
          %v1031 = vld [vmem:[#allocation12 + $0x8] sm:$0xf]
          %v1032 = vld [vmem:[#allocation12 + $0xc] sm:$0xf]
          %v1033 = vld [vmem:[#allocation12 + $0x10] sm:$0xf]
          %v1034 = vld [vmem:[#allocation12 + $0x14] sm:$0xf]
          %v1035 = vld [vmem:[#allocation12 + $0x18] sm:$0xf]
          %v1036 = vld [vmem:[#allocation12 + $0x1c] sm:$0xf]
          %v1037 = vld [vmem:[#allocation12 + $0x20] sm:$0xf]
          %v1038 = vld [vmem:[#allocation12 + $0x24] sm:$0xf]
          %v1039 = vld [vmem:[#allocation12 + $0x28] sm:$0xf]
          %v1040 = vld [vmem:[#allocation12 + $0x2c] sm:$0xf]
          %v1041 = vld [vmem:[#allocation12 + $0x30] sm:$0xf]
          %v1042 = vld [vmem:[#allocation12 + $0x34] sm:$0xf]
          %v1043 = vld [vmem:[#allocation12 + $0x38] sm:$0xf]
          %v1044 = vld [vmem:[#allocation12 + $0x3c] sm:$0xf]
          %v1045 = vld [vmem:[%s457] sm:$0xf]
          %v1046 = vld [vmem:[%s457 + $0x4] sm:$0xf]
          %v1047 = vld [vmem:[%s457 + $0x8] sm:$0xf]
          %v1048 = vld [vmem:[%s457 + $0xc] sm:$0xf]
          %v1049 = vld [vmem:[%s457 + $0x10] sm:$0xf]
          %v1050 = vld [vmem:[%s457 + $0x14] sm:$0xf]
          %v1051 = vld [vmem:[%s457 + $0x18] sm:$0xf]
          %v1052 = vld [vmem:[%s457 + $0x1c] sm:$0xf]
          %v1053 = vld [vmem:[%s457 + $0x20] sm:$0xf]
          %v1054 = vld [vmem:[%s457 + $0x24] sm:$0xf]
          %v1055 = vld [vmem:[%s457 + $0x28] sm:$0xf]
          %v1056 = vld [vmem:[%s457 + $0x2c] sm:$0xf]
          %v1057 = vld [vmem:[%s457 + $0x30] sm:$0xf]
          %v1058 = vld [vmem:[%s457 + $0x34] sm:$0xf]
          %v1059 = vld [vmem:[%s457 + $0x38] sm:$0xf]
          %v1060 = vld [vmem:[%s457 + $0x3c] sm:$0xf]
          %v1061 = vld [vmem:[#allocation14] sm:$0xf]
          %v1062 = vld [vmem:[#allocation14 + $0x4] sm:$0xf]
          %v1063 = vld [vmem:[#allocation14 + $0x8] sm:$0xf]
          %v1064 = vld [vmem:[#allocation14 + $0xc] sm:$0xf]
          %v1065 = vld [vmem:[#allocation14 + $0x10] sm:$0xf]
          %v1066 = vld [vmem:[#allocation14 + $0x14] sm:$0xf]
          %v1067 = vld [vmem:[#allocation14 + $0x18] sm:$0xf]
          %v1068 = vld [vmem:[#allocation14 + $0x1c] sm:$0xf]
          %v1069 = vld [vmem:[#allocation14 + $0x20] sm:$0xf]
          %v1070 = vld [vmem:[#allocation14 + $0x24] sm:$0xf]
          %v1071 = vld [vmem:[#allocation14 + $0x28] sm:$0xf]
          %v1072 = vld [vmem:[#allocation14 + $0x2c] sm:$0xf]
          %v1073 = vld [vmem:[#allocation14 + $0x30] sm:$0xf]
          %v1074 = vld [vmem:[#allocation14 + $0x34] sm:$0xf]
          %v1075 = vld [vmem:[#allocation14 + $0x38] sm:$0xf]
          %v1076 = vld [vmem:[#allocation14 + $0x3c] sm:$0xf]
          %v1093 = vunpack.c.l.b16 %v1045
          %v1094 = vunpack.c.l.b16 %v1046
          %v1095 = vunpack.c.l.b16 %v1047
          %v1096 = vunpack.c.l.b16 %v1048
          %v1097 = vunpack.c.l.b16 %v1049
          %v1098 = vunpack.c.l.b16 %v1050
          %v1099 = vunpack.c.l.b16 %v1051
          %v1100 = vunpack.c.l.b16 %v1052
          %v1101 = vunpack.c.l.b16 %v1053
          %v1102 = vunpack.c.l.b16 %v1054
          %v1103 = vunpack.c.l.b16 %v1055
          %v1104 = vunpack.c.l.b16 %v1056
          %v1105 = vunpack.c.l.b16 %v1057
          %v1106 = vunpack.c.l.b16 %v1058
          %v1107 = vunpack.c.l.b16 %v1059
          %v1108 = vunpack.c.l.b16 %v1060
          %v1109 = vpack.c.b16 %v1094, %v1093
          %v1110 = vpack.c.b16 %v1096, %v1095
          %v1111 = vpack.c.b16 %v1098, %v1097
          %v1112 = vpack.c.b16 %v1100, %v1099
          %v1113 = vpack.c.b16 %v1102, %v1101
          %v1114 = vpack.c.b16 %v1104, %v1103
          %v1115 = vpack.c.b16 %v1106, %v1105
          %v1116 = vpack.c.b16 %v1108, %v1107
          %v1141 = vunpack.c.l.b16 %v1061
          %v1142 = vunpack.c.l.b16 %v1062
          %v1143 = vunpack.c.l.b16 %v1063
          %v1144 = vunpack.c.l.b16 %v1064
          %v1145 = vunpack.c.l.b16 %v1065
          %v1146 = vunpack.c.l.b16 %v1066
          %v1147 = vunpack.c.l.b16 %v1067
          %v1148 = vunpack.c.l.b16 %v1068
          %v1149 = vunpack.c.l.b16 %v1069
          %v1150 = vunpack.c.l.b16 %v1070
          %v1151 = vunpack.c.l.b16 %v1071
          %v1152 = vunpack.c.l.b16 %v1072
          %v1153 = vunpack.c.l.b16 %v1073
          %v1154 = vunpack.c.l.b16 %v1074
          %v1155 = vunpack.c.l.b16 %v1075
          %v1156 = vunpack.c.l.b16 %v1076
          %v1157 = vpack.c.b16 %v1142, %v1141
          %v1158 = vpack.c.b16 %v1144, %v1143
          %v1159 = vpack.c.b16 %v1146, %v1145
          %v1160 = vpack.c.b16 %v1148, %v1147
          %v1161 = vpack.c.b16 %v1150, %v1149
          %v1162 = vpack.c.b16 %v1152, %v1151
          %v1163 = vpack.c.b16 %v1154, %v1153
          %v1164 = vpack.c.b16 %v1156, %v1155
          %1173 = vmatprep.subr.bf16.mxu0 0
          %1174 = vmatpush1.bf16.msra.mxu0 %v1157
          %1175 = vmatprep.subr.bf16.mxu0 0
          %1176 = vmatpush1.bf16.msra.mxu0 %v1158
          %1177 = vmatprep.subr.bf16.mxu0 0
          %1178 = vmatpush1.bf16.msra.mxu0 %v1159
          %1179 = vmatprep.subr.bf16.mxu0 0
          %1180 = vmatpush1.bf16.msra.mxu0 %v1160
          %1181 = vmatprep.subr.bf16.mxu0 0
          %1182 = vmatpush1.bf16.msra.mxu0 %v1161
          %1183 = vmatprep.subr.bf16.mxu0 0
          %1184 = vmatpush1.bf16.msra.mxu0 %v1162
          %1185 = vmatprep.subr.bf16.mxu0 0
          %1186 = vmatpush1.bf16.msra.mxu0 %v1163
          %1187 = vmatprep.subr.bf16.mxu0 0
          %1188 = vmatpush1.bf16.msra.mxu0 %v1164
          %1189 = vmatprep.subr.bf16.mxu0 0
          %1190 = vmatpush1.bf16.msra.mxu0 0
          %1191 = vmatprep.subr.bf16.mxu0 0
          %1192 = vmatpush1.bf16.msra.mxu0 0
          %1193 = vmatprep.subr.bf16.mxu0 0
          %1194 = vmatpush1.bf16.msra.mxu0 0
          %1195 = vmatprep.subr.bf16.mxu0 0
          %1196 = vmatpush1.bf16.msra.mxu0 0
          %1197 = vmatprep.subr.bf16.mxu0 0
          %1198 = vmatpush1.bf16.msra.mxu0 0
          %1199 = vmatprep.subr.bf16.mxu0 0
          %1200 = vmatpush1.bf16.msra.mxu0 0
          %1201 = vmatprep.subr.bf16.mxu0 0
          %1202 = vmatpush1.bf16.msra.mxu0 0
          %1203 = vmatprep.subr.bf16.mxu0 0
          %1204 = vmatpush1.bf16.msra.mxu0 0
          %1205 = vmatprep.mubr.bf16.mxu0 0
          %1206 = vmatmul.mubr.bf16.gmra.mrb[0].mxu0 %v1109
          %v1207 = vpop.f32.mrb[0].mxu0
          %v1208 = vadd.f32 0.0, %v1207
          %v1209 = vpop.f32.mrb[0].mxu0
          %v1210 = vpop.f32.mrb[0].mxu0
          %v1211 = vadd.f32 0.0, %v1210
          %v1212 = vpop.f32.mrb[0].mxu0
          %1213 = vmatprep.mubr.bf16.mxu0 0
          %1214 = vmatmul.mubr.bf16.gmra.mrb[0].mxu0 %v1110
          %v1215 = vpop.f32.mrb[0].mxu0
          %v1216 = vadd.f32 0.0, %v1215
          %v1217 = vpop.f32.mrb[0].mxu0
          %v1218 = vpop.f32.mrb[0].mxu0
          %v1219 = vadd.f32 0.0, %v1218
          %v1220 = vpop.f32.mrb[0].mxu0
          %1221 = vmatprep.mubr.bf16.mxu0 0
          %1222 = vmatmul.mubr.bf16.gmra.mrb[0].mxu0 %v1111
          %v1223 = vpop.f32.mrb[0].mxu0
          %v1224 = vadd.f32 0.0, %v1223
          %v1225 = vpop.f32.mrb[0].mxu0
          %v1226 = vpop.f32.mrb[0].mxu0
          %v1227 = vadd.f32 0.0, %v1226
          %v1228 = vpop.f32.mrb[0].mxu0
          %1229 = vmatprep.mubr.bf16.mxu0 0
          %1230 = vmatmul.mubr.bf16.gmra.mrb[0].mxu0 %v1112
          %v1231 = vpop.f32.mrb[0].mxu0
          %v1232 = vadd.f32 0.0, %v1231
          %v1233 = vpop.f32.mrb[0].mxu0
          %v1234 = vpop.f32.mrb[0].mxu0
          %v1235 = vadd.f32 0.0, %v1234
          %v1236 = vpop.f32.mrb[0].mxu0
          %1237 = vmatprep.mubr.bf16.mxu0 0
          %1238 = vmatmul.mubr.bf16.gmra.mrb[0].mxu0 %v1113
          %v1239 = vpop.f32.mrb[0].mxu0
          %v1240 = vadd.f32 0.0, %v1239
          %v1241 = vpop.f32.mrb[0].mxu0
          %v1242 = vpop.f32.mrb[0].mxu0
          %v1243 = vadd.f32 0.0, %v1242
          %v1244 = vpop.f32.mrb[0].mxu0
          %1245 = vmatprep.mubr.bf16.mxu0 0
          %1246 = vmatmul.mubr.bf16.gmra.mrb[0].mxu0 %v1114
          %v1247 = vpop.f32.mrb[0].mxu0
          %v1248 = vadd.f32 0.0, %v1247
          %v1249 = vpop.f32.mrb[0].mxu0
          %v1250 = vpop.f32.mrb[0].mxu0
          %v1251 = vadd.f32 0.0, %v1250
          %v1252 = vpop.f32.mrb[0].mxu0
          %1253 = vmatprep.mubr.bf16.mxu0 0
          %1254 = vmatmul.mubr.bf16.gmra.mrb[0].mxu0 %v1115
          %v1255 = vpop.f32.mrb[0].mxu0
          %v1256 = vadd.f32 0.0, %v1255
          %v1257 = vpop.f32.mrb[0].mxu0
          %v1258 = vpop.f32.mrb[0].mxu0
          %v1259 = vadd.f32 0.0, %v1258
          %v1260 = vpop.f32.mrb[0].mxu0
          %1261 = vmatprep.mubr.bf16.mxu0 0
          %1262 = vmatmul.mubr.bf16.gmra.mrb[0].mxu0 %v1116
          %v1263 = vpop.f32.mrb[0].mxu0
          %v1264 = vadd.f32 0.0, %v1263
          %v1265 = vpop.f32.mrb[0].mxu0
          %v1266 = vpop.f32.mrb[0].mxu0
          %v1267 = vadd.f32 0.0, %v1266
          %v1268 = vpop.f32.mrb[0].mxu0
          %1269 = vdwg.mxu0
          %v1286 = vunpack.c.l.b16 %v1013
          %v1287 = vunpack.c.l.b16 %v1014
          %v1288 = vunpack.c.l.b16 %v1015
          %v1289 = vunpack.c.l.b16 %v1016
          %v1290 = vunpack.c.l.b16 %v1017
          %v1291 = vunpack.c.l.b16 %v1018
          %v1292 = vunpack.c.l.b16 %v1019
          %v1293 = vunpack.c.l.b16 %v1020
          %v1294 = vunpack.c.l.b16 %v1021
          %v1295 = vunpack.c.l.b16 %v1022
          %v1296 = vunpack.c.l.b16 %v1023
          %v1297 = vunpack.c.l.b16 %v1024
          %v1298 = vunpack.c.l.b16 %v1025
          %v1299 = vunpack.c.l.b16 %v1026
          %v1300 = vunpack.c.l.b16 %v1027
          %v1301 = vunpack.c.l.b16 %v1028
          %v1302 = vpack.c.b16 %v1287, %v1286
          %v1303 = vpack.c.b16 %v1289, %v1288
          %v1304 = vpack.c.b16 %v1291, %v1290
          %v1305 = vpack.c.b16 %v1293, %v1292
          %v1306 = vpack.c.b16 %v1295, %v1294
          %v1307 = vpack.c.b16 %v1297, %v1296
          %v1308 = vpack.c.b16 %v1299, %v1298
          %v1309 = vpack.c.b16 %v1301, %v1300
          %v1334 = vunpack.c.l.b16 %v1029
          %v1335 = vunpack.c.l.b16 %v1030
          %v1336 = vunpack.c.l.b16 %v1031
          %v1337 = vunpack.c.l.b16 %v1032
          %v1338 = vunpack.c.l.b16 %v1033
          %v1339 = vunpack.c.l.b16 %v1034
          %v1340 = vunpack.c.l.b16 %v1035
          %v1341 = vunpack.c.l.b16 %v1036
          %v1342 = vunpack.c.l.b16 %v1037
          %v1343 = vunpack.c.l.b16 %v1038
          %v1344 = vunpack.c.l.b16 %v1039
          %v1345 = vunpack.c.l.b16 %v1040
          %v1346 = vunpack.c.l.b16 %v1041
          %v1347 = vunpack.c.l.b16 %v1042
          %v1348 = vunpack.c.l.b16 %v1043
          %v1349 = vunpack.c.l.b16 %v1044
          %v1350 = vpack.c.b16 %v1335, %v1334
          %v1351 = vpack.c.b16 %v1337, %v1336
          %v1352 = vpack.c.b16 %v1339, %v1338
          %v1353 = vpack.c.b16 %v1341, %v1340
          %v1354 = vpack.c.b16 %v1343, %v1342
          %v1355 = vpack.c.b16 %v1345, %v1344
          %v1356 = vpack.c.b16 %v1347, %v1346
          %v1357 = vpack.c.b16 %v1349, %v1348
          %1366 = vmatprep.subr.bf16.mxu0 0
          %1367 = vmatpush1.bf16.msra.mxu0 %v1350
          %1368 = vmatprep.subr.bf16.mxu0 0
          %1369 = vmatpush1.bf16.msra.mxu0 %v1351
          %1370 = vmatprep.subr.bf16.mxu0 0
          %1371 = vmatpush1.bf16.msra.mxu0 %v1352
          %1372 = vmatprep.subr.bf16.mxu0 0
          %1373 = vmatpush1.bf16.msra.mxu0 %v1353
          %1374 = vmatprep.subr.bf16.mxu0 0
          %1375 = vmatpush1.bf16.msra.mxu0 %v1354
          %1376 = vmatprep.subr.bf16.mxu0 0
          %1377 = vmatpush1.bf16.msra.mxu0 %v1355
          %1378 = vmatprep.subr.bf16.mxu0 0
          %1379 = vmatpush1.bf16.msra.mxu0 %v1356
          %1380 = vmatprep.subr.bf16.mxu0 0
          %1381 = vmatpush1.bf16.msra.mxu0 %v1357
          %1382 = vmatprep.subr.bf16.mxu0 0
          %1383 = vmatpush1.bf16.msra.mxu0 0
          %1384 = vmatprep.subr.bf16.mxu0 0
          %1385 = vmatpush1.bf16.msra.mxu0 0
          %1386 = vmatprep.subr.bf16.mxu0 0
          %1387 = vmatpush1.bf16.msra.mxu0 0
          %1388 = vmatprep.subr.bf16.mxu0 0
          %1389 = vmatpush1.bf16.msra.mxu0 0
          %1390 = vmatprep.subr.bf16.mxu0 0
          %1391 = vmatpush1.bf16.msra.mxu0 0
          %1392 = vmatprep.subr.bf16.mxu0 0
          %1393 = vmatpush1.bf16.msra.mxu0 0
          %1394 = vmatprep.subr.bf16.mxu0 0
          %1395 = vmatpush1.bf16.msra.mxu0 0
          %1396 = vmatprep.subr.bf16.mxu0 0
          %1397 = vmatpush1.bf16.msra.mxu0 0
          %1398 = vmatprep.mubr.bf16.mxu0 0
          %1399 = vmatmul.mubr.bf16.gmra.mrb[0].mxu0 %v1302
          %v1400 = vpop.f32.mrb[0].mxu0
          %v1401 = vadd.f32 %v1208, %v1400
          %v1402 = vpop.f32.mrb[0].mxu0
          %v1403 = vpop.f32.mrb[0].mxu0
          %v1404 = vadd.f32 %v1211, %v1403
          %v1405 = vpop.f32.mrb[0].mxu0
          %1406 = vmatprep.mubr.bf16.mxu0 0
          %1407 = vmatmul.mubr.bf16.gmra.mrb[0].mxu0 %v1303
          %v1408 = vpop.f32.mrb[0].mxu0
          %v1409 = vadd.f32 %v1216, %v1408
          %v1410 = vpop.f32.mrb[0].mxu0
          %v1411 = vpop.f32.mrb[0].mxu0
          %v1412 = vadd.f32 %v1219, %v1411
          %v1413 = vpop.f32.mrb[0].mxu0
          %1414 = vmatprep.mubr.bf16.mxu0 0
          %1415 = vmatmul.mubr.bf16.gmra.mrb[0].mxu0 %v1304
          %v1416 = vpop.f32.mrb[0].mxu0
          %v1417 = vadd.f32 %v1224, %v1416
          %v1418 = vpop.f32.mrb[0].mxu0
          %v1419 = vpop.f32.mrb[0].mxu0
          %v1420 = vadd.f32 %v1227, %v1419
          %v1421 = vpop.f32.mrb[0].mxu0
          %1422 = vmatprep.mubr.bf16.mxu0 0
          %1423 = vmatmul.mubr.bf16.gmra.mrb[0].mxu0 %v1305
          %v1424 = vpop.f32.mrb[0].mxu0
          %v1425 = vadd.f32 %v1232, %v1424
          %v1426 = vpop.f32.mrb[0].mxu0
          %v1427 = vpop.f32.mrb[0].mxu0
          %v1428 = vadd.f32 %v1235, %v1427
          %v1429 = vpop.f32.mrb[0].mxu0
          %1430 = vmatprep.mubr.bf16.mxu0 0
          %1431 = vmatmul.mubr.bf16.gmra.mrb[0].mxu0 %v1306
          %v1432 = vpop.f32.mrb[0].mxu0
          %v1433 = vadd.f32 %v1240, %v1432
          %v1434 = vpop.f32.mrb[0].mxu0
          %v1435 = vpop.f32.mrb[0].mxu0
          %v1436 = vadd.f32 %v1243, %v1435
          %v1437 = vpop.f32.mrb[0].mxu0
          %1438 = vmatprep.mubr.bf16.mxu0 0
          %1439 = vmatmul.mubr.bf16.gmra.mrb[0].mxu0 %v1307
          %v1440 = vpop.f32.mrb[0].mxu0
          %v1441 = vadd.f32 %v1248, %v1440
          %v1442 = vpop.f32.mrb[0].mxu0
          %v1443 = vpop.f32.mrb[0].mxu0
          %v1444 = vadd.f32 %v1251, %v1443
          %v1445 = vpop.f32.mrb[0].mxu0
          %1446 = vmatprep.mubr.bf16.mxu0 0
          %1447 = vmatmul.mubr.bf16.gmra.mrb[0].mxu0 %v1308
          %v1448 = vpop.f32.mrb[0].mxu0
          %v1449 = vadd.f32 %v1256, %v1448
          %v1450 = vpop.f32.mrb[0].mxu0
          %v1451 = vpop.f32.mrb[0].mxu0
          %v1452 = vadd.f32 %v1259, %v1451
          %v1453 = vpop.f32.mrb[0].mxu0
          %1454 = vmatprep.mubr.bf16.mxu0 0
          %1455 = vmatmul.mubr.bf16.gmra.mrb[0].mxu0 %v1309
          %v1456 = vpop.f32.mrb[0].mxu0
          %v1457 = vadd.f32 %v1264, %v1456
          %v1458 = vpop.f32.mrb[0].mxu0
          %v1459 = vpop.f32.mrb[0].mxu0
          %v1460 = vadd.f32 %v1267, %v1459
          %v1461 = vpop.f32.mrb[0].mxu0
          %1462 = vdwg.mxu0
          %v1463 = vld [vmem:[%s487] sm:$0xff]
          %v1464 = vld [vmem:[%s487 + $0x8] sm:$0xff]
          %v1465 = vld [vmem:[%s487 + $0x10] sm:$0xff]
          %v1466 = vld [vmem:[%s487 + $0x18] sm:$0xff]
          %v1467 = vld [vmem:[%s487 + $0x20] sm:$0xff]
          %v1468 = vld [vmem:[%s487 + $0x28] sm:$0xff]
          %v1469 = vld [vmem:[%s487 + $0x30] sm:$0xff]
          %v1470 = vld [vmem:[%s487 + $0x38] sm:$0xff]
          %v1471 = vld [vmem:[%s487 + $0x40] sm:$0xff]
          %v1472 = vld [vmem:[%s487 + $0x48] sm:$0xff]
          %v1473 = vld [vmem:[%s487 + $0x50] sm:$0xff]
          %v1474 = vld [vmem:[%s487 + $0x58] sm:$0xff]
          %v1475 = vld [vmem:[%s487 + $0x60] sm:$0xff]
          %v1476 = vld [vmem:[%s487 + $0x68] sm:$0xff]
          %v1477 = vld [vmem:[%s487 + $0x70] sm:$0xff]
          %v1478 = vld [vmem:[%s487 + $0x78] sm:$0xff]
          %v1479 = vadd.f32 %v1401, %v1463
          %v1480 = vadd.f32 %v1404, %v1464
          %v1481 = vadd.f32 %v1409, %v1465
          %v1482 = vadd.f32 %v1412, %v1466
          %v1483 = vadd.f32 %v1417, %v1467
          %v1484 = vadd.f32 %v1420, %v1468
          %v1485 = vadd.f32 %v1425, %v1469
          %v1486 = vadd.f32 %v1428, %v1470
          %v1487 = vadd.f32 %v1433, %v1471
          %v1488 = vadd.f32 %v1436, %v1472
          %v1489 = vadd.f32 %v1441, %v1473
          %v1490 = vadd.f32 %v1444, %v1474
          %v1491 = vadd.f32 %v1449, %v1475
          %v1492 = vadd.f32 %v1452, %v1476
          %v1493 = vadd.f32 %v1457, %v1477
          %v1494 = vadd.f32 %v1460, %v1478
          %v1495 = vld [vmem:[#allocation2] sm:$0xff]
          %v1496 = vld [vmem:[#allocation2 + $0x8] sm:$0xff]
          %v1497 = vld [vmem:[#allocation2 + $0x10] sm:$0xff]
          %v1498 = vld [vmem:[#allocation2 + $0x18] sm:$0xff]
          %v1499 = vld [vmem:[#allocation2 + $0x20] sm:$0xff]
          %v1500 = vld [vmem:[#allocation2 + $0x28] sm:$0xff]
          %v1501 = vld [vmem:[#allocation2 + $0x30] sm:$0xff]
          %v1502 = vld [vmem:[#allocation2 + $0x38] sm:$0xff]
          %v1503 = vld [vmem:[#allocation2 + $0x40] sm:$0xff]
          %v1504 = vld [vmem:[#allocation2 + $0x48] sm:$0xff]
          %v1505 = vld [vmem:[#allocation2 + $0x50] sm:$0xff]
          %v1506 = vld [vmem:[#allocation2 + $0x58] sm:$0xff]
          %v1507 = vld [vmem:[#allocation2 + $0x60] sm:$0xff]
          %v1508 = vld [vmem:[#allocation2 + $0x68] sm:$0xff]
          %v1509 = vld [vmem:[#allocation2 + $0x70] sm:$0xff]
          %v1510 = vld [vmem:[#allocation2 + $0x78] sm:$0xff]
          %v1511 = vadd.f32 %v1495, %v1479
          %v1512 = vadd.f32 %v1496, %v1480
          %v1513 = vadd.f32 %v1497, %v1481
          %v1514 = vadd.f32 %v1498, %v1482
          %v1515 = vadd.f32 %v1499, %v1483
          %v1516 = vadd.f32 %v1500, %v1484
          %v1517 = vadd.f32 %v1501, %v1485
          %v1518 = vadd.f32 %v1502, %v1486
          %v1519 = vadd.f32 %v1503, %v1487
          %v1520 = vadd.f32 %v1504, %v1488
          %v1521 = vadd.f32 %v1505, %v1489
          %v1522 = vadd.f32 %v1506, %v1490
          %v1523 = vadd.f32 %v1507, %v1491
          %v1524 = vadd.f32 %v1508, %v1492
          %v1525 = vadd.f32 %v1509, %v1493
          %v1526 = vadd.f32 %v1510, %v1494
          %v1527 = vmax.f32 %v1511, 0.0
          %v1528 = vmax.f32 %v1512, 0.0
          %v1529 = vmax.f32 %v1513, 0.0
          %v1530 = vmax.f32 %v1514, 0.0
          %v1531 = vmax.f32 %v1515, 0.0
          %v1532 = vmax.f32 %v1516, 0.0
          %v1533 = vmax.f32 %v1517, 0.0
          %v1534 = vmax.f32 %v1518, 0.0
          %v1535 = vmax.f32 %v1519, 0.0
          %v1536 = vmax.f32 %v1520, 0.0
          %v1537 = vmax.f32 %v1521, 0.0
          %v1538 = vmax.f32 %v1522, 0.0
          %v1539 = vmax.f32 %v1523, 0.0
          %v1540 = vmax.f32 %v1524, 0.0
          %v1541 = vmax.f32 %v1525, 0.0
          %v1542 = vmax.f32 %v1526, 0.0
          %v1543 = vpack.c.bf16 %v1528, %v1527
          %v1544 = vpack.c.bf16 %v1530, %v1529
          %v1545 = vpack.c.bf16 %v1532, %v1531
          %v1546 = vpack.c.bf16 %v1534, %v1533
          %v1547 = vpack.c.bf16 %v1536, %v1535
          %v1548 = vpack.c.bf16 %v1538, %v1537
          %v1549 = vpack.c.bf16 %v1540, %v1539
          %v1550 = vpack.c.bf16 %v1542, %v1541
          %v1559 = vunpack.c.l.b16 %v1543
          %v1560 = vunpack.c.h.b16 %v1543
          %v1561 = vunpack.c.l.b16 %v1544
          %v1562 = vunpack.c.h.b16 %v1544
          %v1563 = vunpack.c.l.b16 %v1545
          %v1564 = vunpack.c.h.b16 %v1545
          %v1565 = vunpack.c.l.b16 %v1546
          %v1566 = vunpack.c.h.b16 %v1546
          %v1567 = vunpack.c.l.b16 %v1547
          %v1568 = vunpack.c.h.b16 %v1547
          %v1569 = vunpack.c.l.b16 %v1548
          %v1570 = vunpack.c.h.b16 %v1548
          %v1571 = vunpack.c.l.b16 %v1549
          %v1572 = vunpack.c.h.b16 %v1549
          %v1573 = vunpack.c.l.b16 %v1550
          %v1574 = vunpack.c.h.b16 %v1550
          %v1575 = vpack.c.b16 %v1559, %v1559
          %v1576 = vpack.c.b16 %v1560, %v1560
          %v1577 = vpack.c.b16 %v1561, %v1561
          %v1578 = vpack.c.b16 %v1562, %v1562
          %v1579 = vpack.c.b16 %v1563, %v1563
          %v1580 = vpack.c.b16 %v1564, %v1564
          %v1581 = vpack.c.b16 %v1565, %v1565
          %v1582 = vpack.c.b16 %v1566, %v1566
          %v1583 = vpack.c.b16 %v1567, %v1567
          %v1584 = vpack.c.b16 %v1568, %v1568
          %v1585 = vpack.c.b16 %v1569, %v1569
          %v1586 = vpack.c.b16 %v1570, %v1570
          %v1587 = vpack.c.b16 %v1571, %v1571
          %v1588 = vpack.c.b16 %v1572, %v1572
          %v1589 = vpack.c.b16 %v1573, %v1573
          %v1590 = vpack.c.b16 %v1574, %v1574
          %1607 = vst [vmem:[%s539] sm:$0xf] %v1575
          %1608 = vst [vmem:[%s539 + $0x4] sm:$0xf] %v1576
          %1609 = vst [vmem:[%s539 + $0x8] sm:$0xf] %v1577
          %1610 = vst [vmem:[%s539 + $0xc] sm:$0xf] %v1578
          %1611 = vst [vmem:[%s539 + $0x10] sm:$0xf] %v1579
          %1612 = vst [vmem:[%s539 + $0x14] sm:$0xf] %v1580
          %1613 = vst [vmem:[%s539 + $0x18] sm:$0xf] %v1581
          %1614 = vst [vmem:[%s539 + $0x1c] sm:$0xf] %v1582
          %1615 = vst [vmem:[%s539 + $0x20] sm:$0xf] %v1583
          %1616 = vst [vmem:[%s539 + $0x24] sm:$0xf] %v1584
          %1617 = vst [vmem:[%s539 + $0x28] sm:$0xf] %v1585
          %1618 = vst [vmem:[%s539 + $0x2c] sm:$0xf] %v1586
          %1619 = vst [vmem:[%s539 + $0x30] sm:$0xf] %v1587
          %1620 = vst [vmem:[%s539 + $0x34] sm:$0xf] %v1588
          %1621 = vst [vmem:[%s539 + $0x38] sm:$0xf] %v1589
          %1622 = vst [vmem:[%s539 + $0x3c] sm:$0xf] %v1590
        $region92: #{tpu_custom_call.1} parent=51 // pred_fallthru
          _
        %s1623 = sand.u32 %s250, 1
        %s1624 = scalar_lea.sflag [#allocation5], %s1623
        %s1625 = sand.u32 %s250, 1
        %s1626 = smul.addr %s1625, 64
        %s1627 = scalar_lea.vmem [#allocation17], %s1626
        // Predicated region
        $region93: #{tpu_custom_call.1} parent=51 // pred_check
          %p1628 = pneg %p260
        $region94: #{tpu_custom_call.1} parent=51 // pred_check_branch
          %1630 = sbr.rel (%p1628) target = $region96
        $region95: #{tpu_custom_call.1} parent=51 // pred_region
          %s1631 = smul.u32 16, %s39
          %s1633 = ssub.s32 1024, 1024
          %1634 = vsyncadd %s1624, %s1633
          %s1635 = smul.addr %s1631, 64
          %s1636 = scalar_lea.hbm %s8, %s1635
          %s1637 = sshll.u32 %s1627, 4
          %s1638 = int_to_ptr.vmem [resolvable:$true] %s1637
          %1643 = dma.vmem_to_hbm [thread:$0]  %s1638, 1024, %s1636, %s1624, 64, 64, 4
        $region96: #{tpu_custom_call.1} parent=51 // pred_fallthru
          _
      $region52: #{tpu_custom_call.1} parent=5 // pred_fallthru
        _
      %p1644 = scmp.le.s32.totalorder 2, %s30
      // Predicated region
      $region97: #{tpu_custom_call.1} parent=5 // pred_check
        %p1645 = pneg %p1644
      $region98: #{tpu_custom_call.1} parent=5 // pred_check_branch
        %1647 = sbr.rel (%p1645) target = $region100
      $region99: #{tpu_custom_call.1} parent=5 // pred_region
        %s1648 = ssub.s32 %s30, 2
        // Predicated region
        $region101: #{tpu_custom_call.1} parent=99 // pred_check
          %p1649 = pneg %p266
        $region102: #{tpu_custom_call.1} parent=99 // pred_check_branch
          %1651 = sbr.rel (%p1649) target = $region104
        $region103: #{tpu_custom_call.1} parent=99 // pred_region
          %s1652 = sand.u32 %s251, 1
          %s1653 = scalar_lea.sflag [#allocation5], %s1652
          %s1654 = sand.u32 %s251, 1
          %s1655 = smul.addr %s1654, 64
          %s1656 = scalar_lea.vmem [#allocation17], %s1655
          %1657 = dma.done %s1653, 1024
        $region104: #{tpu_custom_call.1} parent=99 // pred_fallthru
          _
      $region100: #{tpu_custom_call.1} parent=5 // pred_fallthru
        _
    $region6: #{tpu_custom_call.1} parent=1 // loop_footer
      %s34 = sadd.s32 1, %s30
    $region7: #{tpu_custom_call.1} parent=1 // loop_footer_branch
      %29 = sbr.rel target = $region3
    $region8: #{tpu_custom_call.1} parent=1 // loop_exit
      _
    %1658 = vsyncpa [#allocation4], 1
    %s1659 = scalar_lea.sflag [#allocation4], 1
    %1660 = vsyncpa %s1659, 1
    %1661 = vsyncpa [#allocation7], 1
    %s1662 = scalar_lea.sflag [#allocation7], 1
    %1663 = vsyncpa %s1662, 1
    %1664 = vsyncpa [#allocation10], 1
    %s1665 = scalar_lea.sflag [#allocation10], 1
    %1666 = vsyncpa %s1665, 1
    %1667 = vsyncpa [#allocation13], 1
    %1668 = vsyncpa [#allocation16], 1
    %s1669 = scalar_lea.sflag [#allocation16], 1
    %1670 = vsyncpa %s1669, 1
    %1671 = vsyncpa [#allocation5], 1
    %s1672 = scalar_lea.sflag [#allocation5], 1
    %1673 = vsyncpa %s1672, 1

</llo_original>
